<compile_context>
chip_gen: v7x
topology: tpu7x:2x2x1
jax: 0.10.0
libtpu: 0.0.40
codegen_flags: <defaults>
</compile_context>

<pallas_src>
import functools
import math

import jax
import jax.numpy as jnp
from jax.experimental import pallas as pl
from jax.experimental.pallas import tpu as pltpu

LN_EPS = 1e-12  # DistilBERT LayerNorm eps


def _layer_norm(x, gamma, beta):
    mu = jnp.mean(x, axis=-1, keepdims=True)
    var = jnp.mean((x - mu) ** 2, axis=-1, keepdims=True)
    return (x - mu) * jax.lax.rsqrt(var + LN_EPS) * gamma + beta


def _gelu(x):
    # TODO(synk): PyTorch nn.GELU default is the exact erf form; tanh approximation
    # is used for robust Mosaic lowering (max abs diff ~1e-3).
    c = math.sqrt(2.0 / math.pi)
    return 0.5 * x * (1.0 + jnp.tanh(c * (x + 0.044715 * x * x * x)))


# ---------------------------------------------------------------------------
# Fused encoder-stack kernel
# ---------------------------------------------------------------------------
def encoder_stack_kernel(x0_ref, bias_ref,
                         wqkv_ref, bqkv_ref, wo_ref, bo_ref, ln1g_ref, ln1b_ref,
                         w1_ref, b1_ref, w2_ref, b2_ref, ln2g_ref, ln2b_ref,
                         out_ref, x_scratch, ctx_scratch,
                         *, num_heads, ffn_chunk, batch_tile):
    layer = pl.program_id(1)      # serial layer axis (weights re-stream only here)
    j = pl.program_id(2)          # inner batch-tile axis (weights stay resident)

    # Layer 0: seed the VMEM-resident activation with the pre-normalized embeddings.
    @pl.when(layer == 0)
    def _():
        x_scratch[j] = x0_ref[...]

    x = x_scratch[j]              # (R, H) f32, R = batch_tile * S
    R, H = x.shape
    S = R // batch_tile
    dh = H // num_heads
    scale = 1.0 / math.sqrt(dh)

    # ---- fused QKV projection: bf16 operands, f32 accumulate on the MXU ----
    x_b = x.astype(jnp.bfloat16)
    qkv = jnp.dot(x_b, wqkv_ref[0],
                  preferred_element_type=jnp.float32) + bqkv_ref[0]   # (R, 3H)
    q = qkv[:, :H] * scale        # fold 1/sqrt(dh) into q once
    k = qkv[:, H:2 * H]
    v = qkv[:, 2 * H:]

    # ---- multi-head attention ----
    # Each head's (S, dh) context is written into a lane-dense (R, H) VMEM slab so
    # the output projection is a single K=H matmul and per-head intermediates do
    # not pile up as live values in the unrolled loop.
    for b in range(batch_tile):
        rs = slice(b * S, (b + 1) * S)
        bias_b = bias_ref[b]                                           # (1, S)
        for h in range(num_heads):
            cs = slice(h * dh, (h + 1) * dh)
            sc = jax.lax.dot_general(                                  # q_h @ k_h^T
                q[rs, cs], k[rs, cs],
                (((1,), (1,)), ((), ())),
                preferred_element_type=jnp.float32)                    # (S, S)
            sc = sc + bias_b
            sc = sc - jnp.max(sc, axis=-1, keepdims=True)
            p = jnp.exp(sc)
            p = p * pl.reciprocal(jnp.sum(p, axis=-1, keepdims=True), approx=True)
            ctx_scratch[rs, cs] = jnp.dot(
                p.astype(jnp.bfloat16), v[rs, cs].astype(jnp.bfloat16),
                preferred_element_type=jnp.float32)                    # (S, dh)

    attn = jnp.dot(ctx_scratch[...].astype(jnp.bfloat16), wo_ref[0],
                   preferred_element_type=jnp.float32) + bo_ref[0]     # (R, H)
    x1 = _layer_norm(attn + x, ln1g_ref[0], ln1b_ref[0])

    # ---- FFN, chunked along the wide dim to bound live intermediates ----
    F = w1_ref.shape[2]
    x1_b = x1.astype(jnp.bfloat16)
    ffn = jnp.zeros((R, H), jnp.float32)
    for c0 in range(0, F, ffn_chunk):
        c1 = min(c0 + ffn_chunk, F)
        hid = jnp.dot(x1_b, w1_ref[0, :, c0:c1],
                      preferred_element_type=jnp.float32) + b1_ref[0, :, c0:c1]
        hid = _gelu(hid)
        ffn = ffn + jnp.dot(hid.astype(jnp.bfloat16), w2_ref[0, c0:c1, :],
                            preferred_element_type=jnp.float32)
    ffn = ffn + b2_ref[0]

    x_new = _layer_norm(ffn + x1, ln2g_ref[0], ln2b_ref[0])
    x_scratch[j] = x_new          # carry to the next layer

    # Only the CLS rows are consumed downstream; the (Bt,1,H) block is tiny, so
    # write it every step (the last layer's writeback lands last in HBM).
    for b in range(batch_tile):
        out_ref[b] = x_new[b * S:b * S + 1, :].astype(out_ref.dtype)


# ---------------------------------------------------------------------------
# pallas_call wrapper
# ---------------------------------------------------------------------------
_STACK_WEIGHT_ORDER = ("wqkv", "bqkv", "wo", "bo", "ln1_g", "ln1_b",
                       "w1", "b1", "w2", "b2", "ln2_g", "ln2_b")


def prepare_stacked_params(params):
    """Stack per-layer weights on a leading layer axis; matmul weights -> bf16."""
    layers = params["layers"]

    def stack(name, dtype=None):
        arr = jnp.stack([lp[name] for lp in layers], axis=0)
        return arr.astype(dtype) if dtype is not None else arr

    wqkv = jnp.stack([jnp.concatenate([lp["wq"], lp["wk"], lp["wv"]], axis=1)
                      for lp in layers], axis=0).astype(jnp.bfloat16)   # (L, H, 3H)
    bqkv = jnp.stack([jnp.concatenate([lp["bq"], lp["bk"], lp["bv"]], axis=1)
                      for lp in layers], axis=0)                        # (L, 1, 3H)
    return {
        "wqkv": wqkv, "bqkv": bqkv,
        "wo": stack("wo", jnp.bfloat16), "bo": stack("bo"),
        "ln1_g": stack("ln1_g"), "ln1_b": stack("ln1_b"),
        "w1": stack("w1", jnp.bfloat16), "b1": stack("b1"),
        "w2": stack("w2", jnp.bfloat16), "b2": stack("b2"),
        "ln2_g": stack("ln2_g"), "ln2_b": stack("ln2_b"),
    }


def _vmem_limit_bytes():
    cap = 128 * 1024 * 1024
    try:
        cap = int(pltpu.get_tpu_info().vmem_capacity_bytes)
    except Exception:
        pass
    # ~112 MiB on 128 MiB parts (v5e/v6e), ~48 MiB on 64 MiB parts (v7x).
    return int(min(cap - 16 * 1024 * 1024, 112 * 1024 * 1024))


def encoder_stack(x0, mask_bias, stacked, *, num_heads, batch_tile=1,
                  num_batch_groups=1, ffn_chunk=1024):
    """x0: (B, S, H) f32 pre-normalized embeddings; mask_bias: (B, 1, S) f32."""
    B, S, H = x0.shape
    L = stacked["wqkv"].shape[0]
    F = stacked["w1"].shape[2]
    ffn_chunk = min(ffn_chunk, F)
    assert B % (batch_tile * num_batch_groups) == 0, "batch must tile evenly"
    inner_nbt = B // (batch_tile * num_batch_groups)
    R = batch_tile * S

    x0_flat = x0.reshape(B * S, H).astype(jnp.float32)

    # Grid: (batch groups [megacore-parallel], layers [serial], batch tiles [serial]).
    # Weight blocks are indexed by the layer axis only -> resident across all inner
    # batch steps; they stream from HBM num_batch_groups * L times instead of B * L.
    batch_idx2 = lambda g, l, j: (g * inner_nbt + j, 0)
    batch_idx3 = lambda g, l, j: (g * inner_nbt + j, 0, 0)
    weight_idx = lambda g, l, j: (l, 0, 0)

    weights = [stacked[name] for name in _STACK_WEIGHT_ORDER]

    in_specs = ([pl.BlockSpec((R, H), batch_idx2),                  # embeddings (flat)
                 pl.BlockSpec((batch_tile, 1, S), batch_idx3)] +    # additive key mask
                [pl.BlockSpec((1,) + tuple(w.shape[1:]), weight_idx) for w in weights])

    out = pl.pallas_call(
        functools.partial(encoder_stack_kernel, num_heads=num_heads,
                          ffn_chunk=ffn_chunk, batch_tile=batch_tile),
        out_shape=jax.ShapeDtypeStruct((B, 1, H), jnp.float32),
        grid=(num_batch_groups, L, inner_nbt),
        in_specs=in_specs,
        out_specs=pl.BlockSpec((batch_tile, 1, H), batch_idx3),
        scratch_shapes=[pltpu.VMEM((inner_nbt, R, H), jnp.float32),  # resident activations
                        pltpu.VMEM((R, H), jnp.float32)],            # per-step attn context
        compiler_params=pltpu.CompilerParams(
            dimension_semantics=("parallel", "arbitrary", "arbitrary"),
            vmem_limit_bytes=_vmem_limit_bytes()),
    )(x0_flat, mask_bias, *weights)
    return out[:, 0, :]                                              # (B, H) CLS embedding


# ---------------------------------------------------------------------------
# Model: deterministic synthetic parameters + forward
# ---------------------------------------------------------------------------
def init_params(key, *, vocab_size, max_pos, hidden, ffn, num_layers):
    std = 0.02
    keys = jax.random.split(key, 2 + num_layers)
    params = {
        "word_emb": jax.random.normal(keys[0], (vocab_size, hidden), jnp.float32) * std,
        "pos_emb": jax.random.normal(keys[1], (max_pos, hidden), jnp.float32) * std,
        "emb_ln_g": jnp.ones((1, hidden), jnp.float32),
        "emb_ln_b": jnp.zeros((1, hidden), jnp.float32),
        "layers": [],
    }
    for i in range(num_layers):
        lk = jax.random.split(keys[2 + i], 6)
        params["layers"].append({
            "wq": jax.random.normal(lk[0], (hidden, hidden), jnp.float32) * std,
            "bq": jnp.zeros((1, hidden), jnp.float32),
            "wk": jax.random.normal(lk[1], (hidden, hidden), jnp.float32) * std,
            "bk": jnp.zeros((1, hidden), jnp.float32),
            "wv": jax.random.normal(lk[2], (hidden, hidden), jnp.float32) * std,
            "bv": jnp.zeros((1, hidden), jnp.float32),
            "wo": jax.random.normal(lk[3], (hidden, hidden), jnp.float32) * std,
            "bo": jnp.zeros((1, hidden), jnp.float32),
            "ln1_g": jnp.ones((1, hidden), jnp.float32),
            "ln1_b": jnp.zeros((1, hidden), jnp.float32),
            "w1": jax.random.normal(lk[4], (hidden, ffn), jnp.float32) * std,
            "b1": jnp.zeros((1, ffn), jnp.float32),
            "w2": jax.random.normal(lk[5], (ffn, hidden), jnp.float32) * std,
            "b2": jnp.zeros((1, hidden), jnp.float32),
            "ln2_g": jnp.ones((1, hidden), jnp.float32),
            "ln2_b": jnp.zeros((1, hidden), jnp.float32),
        })
    return params


def sentence_transformer_forward(params, stacked, input_ids, attention_mask, *,
                                 num_heads, batch_tile=1, num_batch_groups=1):
    B, S = input_ids.shape
    # Embedding lookup (gather) + embedding LayerNorm are cheap glue in plain JAX;
    # the full L-layer encoder stack runs inside one fused Pallas kernel.
    emb = params["word_emb"][input_ids] + params["pos_emb"][jnp.arange(S)][None, :, :]
    x0 = _layer_norm(emb, params["emb_ln_g"], params["emb_ln_b"])
    mask_bias = ((attention_mask.astype(jnp.float32) - 1.0) * 1e30).reshape(B, 1, S)
    return encoder_stack(x0, mask_bias, stacked, num_heads=num_heads,
                         batch_tile=batch_tile, num_batch_groups=num_batch_groups)


def reference_forward(params, input_ids, attention_mask, *, num_heads):
    """Pure-JAX (f32) reference mirroring the DistilBERT encoder semantics."""
    B, S = input_ids.shape
    emb = params["word_emb"][input_ids] + params["pos_emb"][jnp.arange(S)][None, :, :]
    x = _layer_norm(emb, params["emb_ln_g"], params["emb_ln_b"])
    H = x.shape[-1]
    dh = H // num_heads
    mask_bias = ((attention_mask.astype(jnp.float32) - 1.0) * 1e30)[:, None, None, :]

    def split(t):
        return t.reshape(B, S, num_heads, dh).transpose(0, 2, 1, 3)

    for lp in params["layers"]:
        q = split(x @ lp["wq"] + lp["bq"]) / math.sqrt(dh)
        k = split(x @ lp["wk"] + lp["bk"])
        v = split(x @ lp["wv"] + lp["bv"])
        sc = jnp.einsum("bhqd,bhkd->bhqk", q, k) + mask_bias
        p = jax.nn.softmax(sc, axis=-1)
        ctx = jnp.einsum("bhqk,bhkd->bhqd", p, v).transpose(0, 2, 1, 3).reshape(B, S, H)
        attn = ctx @ lp["wo"] + lp["bo"]
        x1 = _layer_norm(attn + x, lp["ln1_g"], lp["ln1_b"])
        ffn = _gelu(x1 @ lp["w1"] + lp["b1"]) @ lp["w2"] + lp["b2"]
        x = _layer_norm(ffn + x1, lp["ln2_g"], lp["ln2_b"])
    return x[:, 0, :]


if __name__ == "__main__":
    B, S = 4, 8
    VOCAB, MAX_POS, HIDDEN, HEADS, FFN, LAYERS = 100, 16, 32, 4, 64, 2

    key = jax.random.PRNGKey(0)
    k_param, k_ids = jax.random.split(key)

    params = init_params(k_param, vocab_size=VOCAB, max_pos=MAX_POS,
                         hidden=HIDDEN, ffn=FFN, num_layers=LAYERS)
    stacked = prepare_stacked_params(params)

    input_ids = jax.random.randint(k_ids, (B, S), 0, VOCAB, dtype=jnp.int32)
    attention_mask = (jnp.ones((B, S), dtype=jnp.int32)
                      .at[1, -2:].set(0)       # pad tail of sequence 1
                      .at[3, -3:].set(0))      # pad tail of sequence 3

    embeddings = sentence_transformer_forward(
        params, stacked, input_ids, attention_mask,
        num_heads=HEADS, batch_tile=1, num_batch_groups=2)
    embeddings = jax.block_until_ready(embeddings)

    assert embeddings.shape == (B, HIDDEN)
    assert bool(jnp.all(jnp.isfinite(embeddings)))

    ref = reference_forward(params, input_ids, attention_mask, num_heads=HEADS)
    max_err = float(jnp.max(jnp.abs(embeddings - ref)))
    assert max_err < 1e-1, f"max abs err vs reference: {max_err}"
    print("KERNEL_OK")
</pallas_src>

<mosaic_0001>
module attributes {stable_mosaic.version = 11 : i64} {
  func.func @encoder_stack_kernel(%arg0: i32, %arg1: i32, %arg2: i32, %arg3: memref<8x32xf32, #tpu.memory_space<vmem>>, %arg4: memref<1x1x8xf32, #tpu.memory_space<vmem>>, %arg5: memref<1x32x96xbf16, #tpu.memory_space<vmem>>, %arg6: memref<1x1x96xf32, #tpu.memory_space<vmem>>, %arg7: memref<1x32x32xbf16, #tpu.memory_space<vmem>>, %arg8: memref<1x1x32xf32, #tpu.memory_space<vmem>>, %arg9: memref<1x1x32xf32, #tpu.memory_space<vmem>>, %arg10: memref<1x1x32xf32, #tpu.memory_space<vmem>>, %arg11: memref<1x32x64xbf16, #tpu.memory_space<vmem>>, %arg12: memref<1x1x64xf32, #tpu.memory_space<vmem>>, %arg13: memref<1x64x32xbf16, #tpu.memory_space<vmem>>, %arg14: memref<1x1x32xf32, #tpu.memory_space<vmem>>, %arg15: memref<1x1x32xf32, #tpu.memory_space<vmem>>, %arg16: memref<1x1x32xf32, #tpu.memory_space<vmem>>, %arg17: memref<1x1x32xf32, #tpu.memory_space<vmem>>, %arg18: memref<2x8x32xf32, #tpu.memory_space<vmem>>, %arg19: memref<8x32xf32, #tpu.memory_space<vmem>>) attributes {dimension_semantics = [#tpu.dimension_semantics<parallel>, #tpu.dimension_semantics<arbitrary>, #tpu.dimension_semantics<arbitrary>], iteration_bounds = array<i64: 2, 2, 2>, scalar_prefetch = 0 : i64, scratch_operands = 2 : i64, tpu.core_type = #tpu.core_type<tc>, window_params = [{transform_indices = @transform_0, window_bounds = array<i64: 8, 32>}, {transform_indices = @transform_1, window_bounds = array<i64: 1, 1, 8>}, {transform_indices = @transform_2, window_bounds = array<i64: 1, 32, 96>}, {transform_indices = @transform_3, window_bounds = array<i64: 1, 1, 96>}, {transform_indices = @transform_4, window_bounds = array<i64: 1, 32, 32>}, {transform_indices = @transform_5, window_bounds = array<i64: 1, 1, 32>}, {transform_indices = @transform_6, window_bounds = array<i64: 1, 1, 32>}, {transform_indices = @transform_7, window_bounds = array<i64: 1, 1, 32>}, {transform_indices = @transform_8, window_bounds = array<i64: 1, 32, 64>}, {transform_indices = @transform_9, window_bounds = array<i64: 1, 1, 64>}, {transform_indices = @transform_10, window_bounds = array<i64: 1, 64, 32>}, {transform_indices = @transform_11, window_bounds = array<i64: 1, 1, 32>}, {transform_indices = @transform_12, window_bounds = array<i64: 1, 1, 32>}, {transform_indices = @transform_13, window_bounds = array<i64: 1, 1, 32>}, {transform_indices = @transform_14, window_bounds = array<i64: 1, 1, 32>}]} {
    %c0_i32 = arith.constant 0 : i32
    %0 = arith.cmpi eq, %arg1, %c0_i32 : i32
    %1 = arith.extui %0 : i1 to i32
    %c0_i32_0 = arith.constant 0 : i32
    %2 = arith.cmpi ne, %1, %c0_i32_0 : i32
    scf.if %2 {
      %c0_88 = arith.constant 0 : index
      %c0_89 = arith.constant 0 : index
      %203 = vector.load %arg3[%c0_88, %c0_89] : memref<8x32xf32, #tpu.memory_space<vmem>>, vector<8x32xf32>
      %204 = arith.index_cast %arg2 : i32 to index
      %c0_90 = arith.constant 0 : index
      %c0_91 = arith.constant 0 : index
      %205 = vector.load %arg18[%204, %c0_90, %c0_91] : memref<2x8x32xf32, #tpu.memory_space<vmem>>, vector<1x8x32xf32>
      %206 = vector.shape_cast %205 : vector<1x8x32xf32> to vector<8x32xf32>
      %207 = vector.shape_cast %203 : vector<8x32xf32> to vector<1x8x32xf32>
      tpu.vector_store %arg18[%204, %c0_90, %c0_91], %207 {strides = array<i32>} : memref<2x8x32xf32, #tpu.memory_space<vmem>>, vector<1x8x32xf32>,
    } else {
    }
    %3 = arith.index_cast %arg2 : i32 to index
    %c0 = arith.constant 0 : index
    %c0_1 = arith.constant 0 : index
    %4 = vector.load %arg18[%3, %c0, %c0_1] : memref<2x8x32xf32, #tpu.memory_space<vmem>>, vector<1x8x32xf32>
    %5 = vector.shape_cast %4 : vector<1x8x32xf32> to vector<8x32xf32>
    %6 = arith.truncf %5 : vector<8x32xf32> to vector<8x32xbf16>
    %c0_2 = arith.constant 0 : index
    %c0_3 = arith.constant 0 : index
    %c0_4 = arith.constant 0 : index
    %7 = vector.load %arg5[%c0_2, %c0_3, %c0_4] : memref<1x32x96xbf16, #tpu.memory_space<vmem>>, vector<1x32x96xbf16>
    %8 = vector.shape_cast %7 : vector<1x32x96xbf16> to vector<32x96xbf16>
    %cst = arith.constant dense<0.000000e+00> : vector<8x96xf32>
    %9 = tpu.matmul %6, %8, %cst {dimension_numbers = #tpu.dot_dimension_numbers<[1], [0], [0], [1], [0, 0, 1, 1], [], []>} : vector<8x32xbf16>, vector<32x96xbf16>, vector<8x96xf32> -> vector<8x96xf32>
    %c0_5 = arith.constant 0 : index
    %c0_6 = arith.constant 0 : index
    %c0_7 = arith.constant 0 : index
    %10 = vector.load %arg6[%c0_5, %c0_6, %c0_7] : memref<1x1x96xf32, #tpu.memory_space<vmem>>, vector<1x1x96xf32>
    %11 = vector.shape_cast %10 : vector<1x1x96xf32> to vector<1x96xf32>
    %12 = vector.broadcast %11 : vector<1x96xf32> to vector<8x96xf32>
    %13 = arith.addf %9, %12 : vector<8x96xf32>
    %14 = vector.extract_strided_slice %13 {offsets = [0, 0], sizes = [8, 32], strides = [1, 1]} : vector<8x96xf32> to vector<8x32xf32>
    %cst_8 = arith.constant 0.353553385 : f32
    %15 = vector.broadcast %cst_8 : f32 to vector<8x32xf32>
    %16 = arith.mulf %14, %15 : vector<8x32xf32>
    %17 = vector.extract_strided_slice %13 {offsets = [0, 32], sizes = [8, 32], strides = [1, 1]} : vector<8x96xf32> to vector<8x32xf32>
    %18 = vector.extract_strided_slice %13 {offsets = [0, 64], sizes = [8, 32], strides = [1, 1]} : vector<8x96xf32> to vector<8x32xf32>
    %c0_9 = arith.constant 0 : index
    %c0_10 = arith.constant 0 : index
    %c0_11 = arith.constant 0 : index
    %19 = vector.load %arg4[%c0_9, %c0_10, %c0_11] : memref<1x1x8xf32, #tpu.memory_space<vmem>>, vector<1x1x8xf32>
    %20 = vector.shape_cast %19 : vector<1x1x8xf32> to vector<1x8xf32>
    %21 = vector.extract_strided_slice %16 {offsets = [0, 0], sizes = [8, 8], strides = [1, 1]} : vector<8x32xf32> to vector<8x8xf32>
    %22 = vector.extract_strided_slice %17 {offsets = [0, 0], sizes = [8, 8], strides = [1, 1]} : vector<8x32xf32> to vector<8x8xf32>
    %cst_12 = arith.constant dense<0.000000e+00> : vector<8x8xf32>
    %23 = tpu.matmul %21, %22, %cst_12 {dimension_numbers = #tpu.dot_dimension_numbers<[1], [1], [0], [0], [0, 0, 1, 0], [], []>} : vector<8x8xf32>, vector<8x8xf32>, vector<8x8xf32> -> vector<8x8xf32>
    %24 = vector.broadcast %20 : vector<1x8xf32> to vector<8x8xf32>
    %25 = arith.addf %23, %24 : vector<8x8xf32>
    %cst_13 = arith.constant dense<0xFF800000> : vector<8xf32>
    %26 = vector.multi_reduction <maximumf>, %25, %cst_13 [1] : vector<8x8xf32> to vector<8xf32>
    %27 = vector.shape_cast %26 : vector<8xf32> to vector<8x1xf32>
    %28 = vector.broadcast %27 : vector<8x1xf32> to vector<8x8xf32>
    %29 = arith.subf %25, %28 : vector<8x8xf32>
    %30 = math.exp %29 : vector<8x8xf32>
    %cst_14 = arith.constant dense<0.000000e+00> : vector<8xf32>
    %31 = vector.multi_reduction <add>, %30, %cst_14 [1] : vector<8x8xf32> to vector<8xf32>
    %32 = vector.shape_cast %31 : vector<8xf32> to vector<8x1xf32>
    %33 = tpu.reciprocal %32 {approx = true} : vector<8x1xf32> -> vector<8x1xf32>
    %34 = vector.broadcast %33 : vector<8x1xf32> to vector<8x8xf32>
    %35 = arith.mulf %30, %34 : vector<8x8xf32>
    %36 = arith.truncf %35 : vector<8x8xf32> to vector<8x8xbf16>
    %37 = vector.extract_strided_slice %18 {offsets = [0, 0], sizes = [8, 8], strides = [1, 1]} : vector<8x32xf32> to vector<8x8xf32>
    %38 = arith.truncf %37 : vector<8x8xf32> to vector<8x8xbf16>
    %cst_15 = arith.constant dense<0.000000e+00> : vector<8x8xf32>
    %39 = tpu.matmul %36, %38, %cst_15 {dimension_numbers = #tpu.dot_dimension_numbers<[1], [0], [0], [1], [0, 0, 1, 1], [], []>} : vector<8x8xbf16>, vector<8x8xbf16>, vector<8x8xf32> -> vector<8x8xf32>
    %c0_16 = arith.constant 0 : index
    %c0_17 = arith.constant 0 : index
    %40 = vector.load %arg19[%c0_16, %c0_17] : memref<8x32xf32, #tpu.memory_space<vmem>>, vector<8x8xf32>
    tpu.vector_store %arg19[%c0_16, %c0_17], %39 {strides = array<i32>} : memref<8x32xf32, #tpu.memory_space<vmem>>, vector<8x8xf32>,
    %41 = vector.extract_strided_slice %16 {offsets = [0, 8], sizes = [8, 8], strides = [1, 1]} : vector<8x32xf32> to vector<8x8xf32>
    %42 = vector.extract_strided_slice %17 {offsets = [0, 8], sizes = [8, 8], strides = [1, 1]} : vector<8x32xf32> to vector<8x8xf32>
    %cst_18 = arith.constant dense<0.000000e+00> : vector<8x8xf32>
    %43 = tpu.matmul %41, %42, %cst_18 {dimension_numbers = #tpu.dot_dimension_numbers<[1], [1], [0], [0], [0, 0, 1, 0], [], []>} : vector<8x8xf32>, vector<8x8xf32>, vector<8x8xf32> -> vector<8x8xf32>
    %44 = vector.broadcast %20 : vector<1x8xf32> to vector<8x8xf32>
    %45 = arith.addf %43, %44 : vector<8x8xf32>
    %cst_19 = arith.constant dense<0xFF800000> : vector<8xf32>
    %46 = vector.multi_reduction <maximumf>, %45, %cst_19 [1] : vector<8x8xf32> to vector<8xf32>
    %47 = vector.shape_cast %46 : vector<8xf32> to vector<8x1xf32>
    %48 = vector.broadcast %47 : vector<8x1xf32> to vector<8x8xf32>
    %49 = arith.subf %45, %48 : vector<8x8xf32>
    %50 = math.exp %49 : vector<8x8xf32>
    %cst_20 = arith.constant dense<0.000000e+00> : vector<8xf32>
    %51 = vector.multi_reduction <add>, %50, %cst_20 [1] : vector<8x8xf32> to vector<8xf32>
    %52 = vector.shape_cast %51 : vector<8xf32> to vector<8x1xf32>
    %53 = tpu.reciprocal %52 {approx = true} : vector<8x1xf32> -> vector<8x1xf32>
    %54 = vector.broadcast %53 : vector<8x1xf32> to vector<8x8xf32>
    %55 = arith.mulf %50, %54 : vector<8x8xf32>
    %56 = arith.truncf %55 : vector<8x8xf32> to vector<8x8xbf16>
    %57 = vector.extract_strided_slice %18 {offsets = [0, 8], sizes = [8, 8], strides = [1, 1]} : vector<8x32xf32> to vector<8x8xf32>
    %58 = arith.truncf %57 : vector<8x8xf32> to vector<8x8xbf16>
    %cst_21 = arith.constant dense<0.000000e+00> : vector<8x8xf32>
    %59 = tpu.matmul %56, %58, %cst_21 {dimension_numbers = #tpu.dot_dimension_numbers<[1], [0], [0], [1], [0, 0, 1, 1], [], []>} : vector<8x8xbf16>, vector<8x8xbf16>, vector<8x8xf32> -> vector<8x8xf32>
    %c0_22 = arith.constant 0 : index
    %c8 = arith.constant 8 : index
    %60 = vector.load %arg19[%c0_22, %c8] : memref<8x32xf32, #tpu.memory_space<vmem>>, vector<8x8xf32>
    tpu.vector_store %arg19[%c0_22, %c8], %59 {strides = array<i32>} : memref<8x32xf32, #tpu.memory_space<vmem>>, vector<8x8xf32>,
    %61 = vector.extract_strided_slice %16 {offsets = [0, 16], sizes = [8, 8], strides = [1, 1]} : vector<8x32xf32> to vector<8x8xf32>
    %62 = vector.extract_strided_slice %17 {offsets = [0, 16], sizes = [8, 8], strides = [1, 1]} : vector<8x32xf32> to vector<8x8xf32>
    %cst_23 = arith.constant dense<0.000000e+00> : vector<8x8xf32>
    %63 = tpu.matmul %61, %62, %cst_23 {dimension_numbers = #tpu.dot_dimension_numbers<[1], [1], [0], [0], [0, 0, 1, 0], [], []>} : vector<8x8xf32>, vector<8x8xf32>, vector<8x8xf32> -> vector<8x8xf32>
    %64 = vector.broadcast %20 : vector<1x8xf32> to vector<8x8xf32>
    %65 = arith.addf %63, %64 : vector<8x8xf32>
    %cst_24 = arith.constant dense<0xFF800000> : vector<8xf32>
    %66 = vector.multi_reduction <maximumf>, %65, %cst_24 [1] : vector<8x8xf32> to vector<8xf32>
    %67 = vector.shape_cast %66 : vector<8xf32> to vector<8x1xf32>
    %68 = vector.broadcast %67 : vector<8x1xf32> to vector<8x8xf32>
    %69 = arith.subf %65, %68 : vector<8x8xf32>
    %70 = math.exp %69 : vector<8x8xf32>
    %cst_25 = arith.constant dense<0.000000e+00> : vector<8xf32>
    %71 = vector.multi_reduction <add>, %70, %cst_25 [1] : vector<8x8xf32> to vector<8xf32>
    %72 = vector.shape_cast %71 : vector<8xf32> to vector<8x1xf32>
    %73 = tpu.reciprocal %72 {approx = true} : vector<8x1xf32> -> vector<8x1xf32>
    %74 = vector.broadcast %73 : vector<8x1xf32> to vector<8x8xf32>
    %75 = arith.mulf %70, %74 : vector<8x8xf32>
    %76 = arith.truncf %75 : vector<8x8xf32> to vector<8x8xbf16>
    %77 = vector.extract_strided_slice %18 {offsets = [0, 16], sizes = [8, 8], strides = [1, 1]} : vector<8x32xf32> to vector<8x8xf32>
    %78 = arith.truncf %77 : vector<8x8xf32> to vector<8x8xbf16>
    %cst_26 = arith.constant dense<0.000000e+00> : vector<8x8xf32>
    %79 = tpu.matmul %76, %78, %cst_26 {dimension_numbers = #tpu.dot_dimension_numbers<[1], [0], [0], [1], [0, 0, 1, 1], [], []>} : vector<8x8xbf16>, vector<8x8xbf16>, vector<8x8xf32> -> vector<8x8xf32>
    %c0_27 = arith.constant 0 : index
    %c16 = arith.constant 16 : index
    %80 = vector.load %arg19[%c0_27, %c16] : memref<8x32xf32, #tpu.memory_space<vmem>>, vector<8x8xf32>
    tpu.vector_store %arg19[%c0_27, %c16], %79 {strides = array<i32>} : memref<8x32xf32, #tpu.memory_space<vmem>>, vector<8x8xf32>,
    %81 = vector.extract_strided_slice %16 {offsets = [0, 24], sizes = [8, 8], strides = [1, 1]} : vector<8x32xf32> to vector<8x8xf32>
    %82 = vector.extract_strided_slice %17 {offsets = [0, 24], sizes = [8, 8], strides = [1, 1]} : vector<8x32xf32> to vector<8x8xf32>
    %cst_28 = arith.constant dense<0.000000e+00> : vector<8x8xf32>
    %83 = tpu.matmul %81, %82, %cst_28 {dimension_numbers = #tpu.dot_dimension_numbers<[1], [1], [0], [0], [0, 0, 1, 0], [], []>} : vector<8x8xf32>, vector<8x8xf32>, vector<8x8xf32> -> vector<8x8xf32>
    %84 = vector.broadcast %20 : vector<1x8xf32> to vector<8x8xf32>
    %85 = arith.addf %83, %84 : vector<8x8xf32>
    %cst_29 = arith.constant dense<0xFF800000> : vector<8xf32>
    %86 = vector.multi_reduction <maximumf>, %85, %cst_29 [1] : vector<8x8xf32> to vector<8xf32>
    %87 = vector.shape_cast %86 : vector<8xf32> to vector<8x1xf32>
    %88 = vector.broadcast %87 : vector<8x1xf32> to vector<8x8xf32>
    %89 = arith.subf %85, %88 : vector<8x8xf32>
    %90 = math.exp %89 : vector<8x8xf32>
    %cst_30 = arith.constant dense<0.000000e+00> : vector<8xf32>
    %91 = vector.multi_reduction <add>, %90, %cst_30 [1] : vector<8x8xf32> to vector<8xf32>
    %92 = vector.shape_cast %91 : vector<8xf32> to vector<8x1xf32>
    %93 = tpu.reciprocal %92 {approx = true} : vector<8x1xf32> -> vector<8x1xf32>
    %94 = vector.broadcast %93 : vector<8x1xf32> to vector<8x8xf32>
    %95 = arith.mulf %90, %94 : vector<8x8xf32>
    %96 = arith.truncf %95 : vector<8x8xf32> to vector<8x8xbf16>
    %97 = vector.extract_strided_slice %18 {offsets = [0, 24], sizes = [8, 8], strides = [1, 1]} : vector<8x32xf32> to vector<8x8xf32>
    %98 = arith.truncf %97 : vector<8x8xf32> to vector<8x8xbf16>
    %cst_31 = arith.constant dense<0.000000e+00> : vector<8x8xf32>
    %99 = tpu.matmul %96, %98, %cst_31 {dimension_numbers = #tpu.dot_dimension_numbers<[1], [0], [0], [1], [0, 0, 1, 1], [], []>} : vector<8x8xbf16>, vector<8x8xbf16>, vector<8x8xf32> -> vector<8x8xf32>
    %c0_32 = arith.constant 0 : index
    %c24 = arith.constant 24 : index
    %100 = vector.load %arg19[%c0_32, %c24] : memref<8x32xf32, #tpu.memory_space<vmem>>, vector<8x8xf32>
    tpu.vector_store %arg19[%c0_32, %c24], %99 {strides = array<i32>} : memref<8x32xf32, #tpu.memory_space<vmem>>, vector<8x8xf32>,
    %c0_33 = arith.constant 0 : index
    %c0_34 = arith.constant 0 : index
    %101 = vector.load %arg19[%c0_33, %c0_34] : memref<8x32xf32, #tpu.memory_space<vmem>>, vector<8x32xf32>
    %102 = arith.truncf %101 : vector<8x32xf32> to vector<8x32xbf16>
    %c0_35 = arith.constant 0 : index
    %c0_36 = arith.constant 0 : index
    %c0_37 = arith.constant 0 : index
    %103 = vector.load %arg7[%c0_35, %c0_36, %c0_37] : memref<1x32x32xbf16, #tpu.memory_space<vmem>>, vector<1x32x32xbf16>
    %104 = vector.shape_cast %103 : vector<1x32x32xbf16> to vector<32x32xbf16>
    %cst_38 = arith.constant dense<0.000000e+00> : vector<8x32xf32>
    %105 = tpu.matmul %102, %104, %cst_38 {dimension_numbers = #tpu.dot_dimension_numbers<[1], [0], [0], [1], [0, 0, 1, 1], [], []>} : vector<8x32xbf16>, vector<32x32xbf16>, vector<8x32xf32> -> vector<8x32xf32>
    %c0_39 = arith.constant 0 : index
    %c0_40 = arith.constant 0 : index
    %c0_41 = arith.constant 0 : index
    %106 = vector.load %arg8[%c0_39, %c0_40, %c0_41] : memref<1x1x32xf32, #tpu.memory_space<vmem>>, vector<1x1x32xf32>
    %107 = vector.shape_cast %106 : vector<1x1x32xf32> to vector<1x32xf32>
    %108 = vector.broadcast %107 : vector<1x32xf32> to vector<8x32xf32>
    %109 = arith.addf %105, %108 : vector<8x32xf32>
    %110 = arith.addf %109, %5 : vector<8x32xf32>
    %c0_42 = arith.constant 0 : index
    %c0_43 = arith.constant 0 : index
    %c0_44 = arith.constant 0 : index
    %111 = vector.load %arg9[%c0_42, %c0_43, %c0_44] : memref<1x1x32xf32, #tpu.memory_space<vmem>>, vector<1x1x32xf32>
    %112 = vector.shape_cast %111 : vector<1x1x32xf32> to vector<1x32xf32>
    %c0_45 = arith.constant 0 : index
    %c0_46 = arith.constant 0 : index
    %c0_47 = arith.constant 0 : index
    %113 = vector.load %arg10[%c0_45, %c0_46, %c0_47] : memref<1x1x32xf32, #tpu.memory_space<vmem>>, vector<1x1x32xf32>
    %114 = vector.shape_cast %113 : vector<1x1x32xf32> to vector<1x32xf32>
    %cst_48 = arith.constant dense<0.000000e+00> : vector<8xf32>
    %115 = vector.multi_reduction <add>, %110, %cst_48 [1] : vector<8x32xf32> to vector<8xf32>
    %116 = vector.shape_cast %115 : vector<8xf32> to vector<8x1xf32>
    %cst_49 = arith.constant 3.200000e+01 : f32
    %117 = vector.broadcast %cst_49 : f32 to vector<8x1xf32>
    %118 = arith.divf %116, %117 : vector<8x1xf32>
    %119 = vector.broadcast %118 : vector<8x1xf32> to vector<8x32xf32>
    %120 = arith.subf %110, %119 : vector<8x32xf32>
    %121 = arith.mulf %120, %120 : vector<8x32xf32>
    %cst_50 = arith.constant dense<0.000000e+00> : vector<8xf32>
    %122 = vector.multi_reduction <add>, %121, %cst_50 [1] : vector<8x32xf32> to vector<8xf32>
    %123 = vector.shape_cast %122 : vector<8xf32> to vector<8x1xf32>
    %cst_51 = arith.constant 3.200000e+01 : f32
    %124 = vector.broadcast %cst_51 : f32 to vector<8x1xf32>
    %125 = arith.divf %123, %124 : vector<8x1xf32>
    %126 = vector.broadcast %118 : vector<8x1xf32> to vector<8x32xf32>
    %127 = arith.subf %110, %126 : vector<8x32xf32>
    %cst_52 = arith.constant 9.99999996E-13 : f32
    %128 = vector.broadcast %cst_52 : f32 to vector<8x1xf32>
    %129 = arith.addf %125, %128 : vector<8x1xf32>
    %130 = math.rsqrt %129 : vector<8x1xf32>
    %131 = vector.broadcast %130 : vector<8x1xf32> to vector<8x32xf32>
    %132 = arith.mulf %127, %131 : vector<8x32xf32>
    %133 = vector.broadcast %112 : vector<1x32xf32> to vector<8x32xf32>
    %134 = arith.mulf %132, %133 : vector<8x32xf32>
    %135 = vector.broadcast %114 : vector<1x32xf32> to vector<8x32xf32>
    %136 = arith.addf %134, %135 : vector<8x32xf32>
    %137 = arith.truncf %136 : vector<8x32xf32> to vector<8x32xbf16>
    %cst_53 = arith.constant 0.000000e+00 : f32
    %138 = vector.broadcast %cst_53 : f32 to vector<8x32xf32>
    %c0_54 = arith.constant 0 : index
    %c0_55 = arith.constant 0 : index
    %c0_56 = arith.constant 0 : index
    %139 = vector.load %arg11[%c0_54, %c0_55, %c0_56] : memref<1x32x64xbf16, #tpu.memory_space<vmem>>, vector<1x32x64xbf16>
    %140 = vector.shape_cast %139 : vector<1x32x64xbf16> to vector<32x64xbf16>
    %cst_57 = arith.constant dense<0.000000e+00> : vector<8x64xf32>
    %141 = tpu.matmul %137, %140, %cst_57 {dimension_numbers = #tpu.dot_dimension_numbers<[1], [0], [0], [1], [0, 0, 1, 1], [], []>} : vector<8x32xbf16>, vector<32x64xbf16>, vector<8x64xf32> -> vector<8x64xf32>
    %c0_58 = arith.constant 0 : index
    %c0_59 = arith.constant 0 : index
    %c0_60 = arith.constant 0 : index
    %142 = vector.load %arg12[%c0_58, %c0_59, %c0_60] : memref<1x1x64xf32, #tpu.memory_space<vmem>>, vector<1x1x64xf32>
    %143 = vector.shape_cast %142 : vector<1x1x64xf32> to vector<1x64xf32>
    %144 = vector.broadcast %143 : vector<1x64xf32> to vector<8x64xf32>
    %145 = arith.addf %141, %144 : vector<8x64xf32>
    %cst_61 = arith.constant 5.000000e-01 : f32
    %146 = vector.broadcast %cst_61 : f32 to vector<8x64xf32>
    %147 = arith.mulf %146, %145 : vector<8x64xf32>
    %cst_62 = arith.constant 4.471500e-02 : f32
    %148 = vector.broadcast %cst_62 : f32 to vector<8x64xf32>
    %149 = arith.mulf %148, %145 : vector<8x64xf32>
    %150 = arith.mulf %149, %145 : vector<8x64xf32>
    %151 = arith.mulf %150, %145 : vector<8x64xf32>
    %152 = arith.addf %145, %151 : vector<8x64xf32>
    %cst_63 = arith.constant 0.797884583 : f32
    %153 = vector.broadcast %cst_63 : f32 to vector<8x64xf32>
    %154 = arith.mulf %153, %152 : vector<8x64xf32>
    %155 = math.tanh %154 : vector<8x64xf32>
    %cst_64 = arith.constant 1.000000e+00 : f32
    %156 = vector.broadcast %cst_64 : f32 to vector<8x64xf32>
    %157 = arith.addf %156, %155 : vector<8x64xf32>
    %158 = arith.mulf %147, %157 : vector<8x64xf32>
    %159 = arith.truncf %158 : vector<8x64xf32> to vector<8x64xbf16>
    %c0_65 = arith.constant 0 : index
    %c0_66 = arith.constant 0 : index
    %c0_67 = arith.constant 0 : index
    %160 = vector.load %arg13[%c0_65, %c0_66, %c0_67] : memref<1x64x32xbf16, #tpu.memory_space<vmem>>, vector<1x64x32xbf16>
    %161 = vector.shape_cast %160 : vector<1x64x32xbf16> to vector<64x32xbf16>
    %cst_68 = arith.constant dense<0.000000e+00> : vector<8x32xf32>
    %162 = tpu.matmul %159, %161, %cst_68 {dimension_numbers = #tpu.dot_dimension_numbers<[1], [0], [0], [1], [0, 0, 1, 1], [], []>} : vector<8x64xbf16>, vector<64x32xbf16>, vector<8x32xf32> -> vector<8x32xf32>
    %163 = arith.addf %138, %162 : vector<8x32xf32>
    %c0_69 = arith.constant 0 : index
    %c0_70 = arith.constant 0 : index
    %c0_71 = arith.constant 0 : index
    %164 = vector.load %arg14[%c0_69, %c0_70, %c0_71] : memref<1x1x32xf32, #tpu.memory_space<vmem>>, vector<1x1x32xf32>
    %165 = vector.shape_cast %164 : vector<1x1x32xf32> to vector<1x32xf32>
    %166 = vector.broadcast %165 : vector<1x32xf32> to vector<8x32xf32>
    %167 = arith.addf %163, %166 : vector<8x32xf32>
    %168 = arith.addf %167, %136 : vector<8x32xf32>
    %c0_72 = arith.constant 0 : index
    %c0_73 = arith.constant 0 : index
    %c0_74 = arith.constant 0 : index
    %169 = vector.load %arg15[%c0_72, %c0_73, %c0_74] : memref<1x1x32xf32, #tpu.memory_space<vmem>>, vector<1x1x32xf32>
    %170 = vector.shape_cast %169 : vector<1x1x32xf32> to vector<1x32xf32>
    %c0_75 = arith.constant 0 : index
    %c0_76 = arith.constant 0 : index
    %c0_77 = arith.constant 0 : index
    %171 = vector.load %arg16[%c0_75, %c0_76, %c0_77] : memref<1x1x32xf32, #tpu.memory_space<vmem>>, vector<1x1x32xf32>
    %172 = vector.shape_cast %171 : vector<1x1x32xf32> to vector<1x32xf32>
    %cst_78 = arith.constant dense<0.000000e+00> : vector<8xf32>
    %173 = vector.multi_reduction <add>, %168, %cst_78 [1] : vector<8x32xf32> to vector<8xf32>
    %174 = vector.shape_cast %173 : vector<8xf32> to vector<8x1xf32>
    %cst_79 = arith.constant 3.200000e+01 : f32
    %175 = vector.broadcast %cst_79 : f32 to vector<8x1xf32>
    %176 = arith.divf %174, %175 : vector<8x1xf32>
    %177 = vector.broadcast %176 : vector<8x1xf32> to vector<8x32xf32>
    %178 = arith.subf %168, %177 : vector<8x32xf32>
    %179 = arith.mulf %178, %178 : vector<8x32xf32>
    %cst_80 = arith.constant dense<0.000000e+00> : vector<8xf32>
    %180 = vector.multi_reduction <add>, %179, %cst_80 [1] : vector<8x32xf32> to vector<8xf32>
    %181 = vector.shape_cast %180 : vector<8xf32> to vector<8x1xf32>
    %cst_81 = arith.constant 3.200000e+01 : f32
    %182 = vector.broadcast %cst_81 : f32 to vector<8x1xf32>
    %183 = arith.divf %181, %182 : vector<8x1xf32>
    %184 = vector.broadcast %176 : vector<8x1xf32> to vector<8x32xf32>
    %185 = arith.subf %168, %184 : vector<8x32xf32>
    %cst_82 = arith.constant 9.99999996E-13 : f32
    %186 = vector.broadcast %cst_82 : f32 to vector<8x1xf32>
    %187 = arith.addf %183, %186 : vector<8x1xf32>
    %188 = math.rsqrt %187 : vector<8x1xf32>
    %189 = vector.broadcast %188 : vector<8x1xf32> to vector<8x32xf32>
    %190 = arith.mulf %185, %189 : vector<8x32xf32>
    %191 = vector.broadcast %170 : vector<1x32xf32> to vector<8x32xf32>
    %192 = arith.mulf %190, %191 : vector<8x32xf32>
    %193 = vector.broadcast %172 : vector<1x32xf32> to vector<8x32xf32>
    %194 = arith.addf %192, %193 : vector<8x32xf32>
    %195 = arith.index_cast %arg2 : i32 to index
    %c0_83 = arith.constant 0 : index
    %c0_84 = arith.constant 0 : index
    %196 = vector.load %arg18[%195, %c0_83, %c0_84] : memref<2x8x32xf32, #tpu.memory_space<vmem>>, vector<1x8x32xf32>
    %197 = vector.shape_cast %196 : vector<1x8x32xf32> to vector<8x32xf32>
    %198 = vector.shape_cast %194 : vector<8x32xf32> to vector<1x8x32xf32>
    tpu.vector_store %arg18[%195, %c0_83, %c0_84], %198 {strides = array<i32>} : memref<2x8x32xf32, #tpu.memory_space<vmem>>, vector<1x8x32xf32>,
    %199 = vector.extract_strided_slice %194 {offsets = [0, 0], sizes = [1, 32], strides = [1, 1]} : vector<8x32xf32> to vector<1x32xf32>
    %c0_85 = arith.constant 0 : index
    %c0_86 = arith.constant 0 : index
    %c0_87 = arith.constant 0 : index
    %200 = vector.load %arg17[%c0_85, %c0_86, %c0_87] : memref<1x1x32xf32, #tpu.memory_space<vmem>>, vector<1x1x32xf32>
    %201 = vector.shape_cast %200 : vector<1x1x32xf32> to vector<1x32xf32>
    %202 = vector.shape_cast %199 : vector<1x32xf32> to vector<1x1x32xf32>
    tpu.vector_store %arg17[%c0_85, %c0_86, %c0_87], %202 {strides = array<i32>} : memref<1x1x32xf32, #tpu.memory_space<vmem>>, vector<1x1x32xf32>,
    return
  }
  func.func @transform_0(%arg0: i32, %arg1: i32, %arg2: i32) -> (i32, i32) {
    %c2_i32 = arith.constant 2 : i32
    %0 = arith.muli %arg0, %c2_i32 : i32
    %1 = arith.addi %0, %arg2 : i32
    %c0_i32 = arith.constant 0 : i32
    %c0_i32_0 = arith.constant 0 : i32
    return %1, %c0_i32 : i32, i32
  }
  func.func @transform_1(%arg0: i32, %arg1: i32, %arg2: i32) -> (i32, i32, i32) {
    %c2_i32 = arith.constant 2 : i32
    %0 = arith.muli %arg0, %c2_i32 : i32
    %1 = arith.addi %0, %arg2 : i32
    %c0_i32 = arith.constant 0 : i32
    %c0_i32_0 = arith.constant 0 : i32
    %c0_i32_1 = arith.constant 0 : i32
    return %1, %c0_i32, %c0_i32_0 : i32, i32, i32
  }
  func.func @transform_2(%arg0: i32, %arg1: i32, %arg2: i32) -> (i32, i32, i32) {
    %c0_i32 = arith.constant 0 : i32
    %c0_i32_0 = arith.constant 0 : i32
    %c0_i32_1 = arith.constant 0 : i32
    return %arg1, %c0_i32, %c0_i32_0 : i32, i32, i32
  }
  func.func @transform_3(%arg0: i32, %arg1: i32, %arg2: i32) -> (i32, i32, i32) {
    %c0_i32 = arith.constant 0 : i32
    %c0_i32_0 = arith.constant 0 : i32
    %c0_i32_1 = arith.constant 0 : i32
    return %arg1, %c0_i32, %c0_i32_0 : i32, i32, i32
  }
  func.func @transform_4(%arg0: i32, %arg1: i32, %arg2: i32) -> (i32, i32, i32) {
    %c0_i32 = arith.constant 0 : i32
    %c0_i32_0 = arith.constant 0 : i32
    %c0_i32_1 = arith.constant 0 : i32
    return %arg1, %c0_i32, %c0_i32_0 : i32, i32, i32
  }
  func.func @transform_5(%arg0: i32, %arg1: i32, %arg2: i32) -> (i32, i32, i32) {
    %c0_i32 = arith.constant 0 : i32
    %c0_i32_0 = arith.constant 0 : i32
    %c0_i32_1 = arith.constant 0 : i32
    return %arg1, %c0_i32, %c0_i32_0 : i32, i32, i32
  }
  func.func @transform_6(%arg0: i32, %arg1: i32, %arg2: i32) -> (i32, i32, i32) {
    %c0_i32 = arith.constant 0 : i32
    %c0_i32_0 = arith.constant 0 : i32
    %c0_i32_1 = arith.constant 0 : i32
    return %arg1, %c0_i32, %c0_i32_0 : i32, i32, i32
  }
  func.func @transform_7(%arg0: i32, %arg1: i32, %arg2: i32) -> (i32, i32, i32) {
    %c0_i32 = arith.constant 0 : i32
    %c0_i32_0 = arith.constant 0 : i32
    %c0_i32_1 = arith.constant 0 : i32
    return %arg1, %c0_i32, %c0_i32_0 : i32, i32, i32
  }
  func.func @transform_8(%arg0: i32, %arg1: i32, %arg2: i32) -> (i32, i32, i32) {
    %c0_i32 = arith.constant 0 : i32
    %c0_i32_0 = arith.constant 0 : i32
    %c0_i32_1 = arith.constant 0 : i32
    return %arg1, %c0_i32, %c0_i32_0 : i32, i32, i32
  }
  func.func @transform_9(%arg0: i32, %arg1: i32, %arg2: i32) -> (i32, i32, i32) {
    %c0_i32 = arith.constant 0 : i32
    %c0_i32_0 = arith.constant 0 : i32
    %c0_i32_1 = arith.constant 0 : i32
    return %arg1, %c0_i32, %c0_i32_0 : i32, i32, i32
  }
  func.func @transform_10(%arg0: i32, %arg1: i32, %arg2: i32) -> (i32, i32, i32) {
    %c0_i32 = arith.constant 0 : i32
    %c0_i32_0 = arith.constant 0 : i32
    %c0_i32_1 = arith.constant 0 : i32
    return %arg1, %c0_i32, %c0_i32_0 : i32, i32, i32
  }
  func.func @transform_11(%arg0: i32, %arg1: i32, %arg2: i32) -> (i32, i32, i32) {
    %c0_i32 = arith.constant 0 : i32
    %c0_i32_0 = arith.constant 0 : i32
    %c0_i32_1 = arith.constant 0 : i32
    return %arg1, %c0_i32, %c0_i32_0 : i32, i32, i32
  }
  func.func @transform_12(%arg0: i32, %arg1: i32, %arg2: i32) -> (i32, i32, i32) {
    %c0_i32 = arith.constant 0 : i32
    %c0_i32_0 = arith.constant 0 : i32
    %c0_i32_1 = arith.constant 0 : i32
    return %arg1, %c0_i32, %c0_i32_0 : i32, i32, i32
  }
  func.func @transform_13(%arg0: i32, %arg1: i32, %arg2: i32) -> (i32, i32, i32) {
    %c0_i32 = arith.constant 0 : i32
    %c0_i32_0 = arith.constant 0 : i32
    %c0_i32_1 = arith.constant 0 : i32
    return %arg1, %c0_i32, %c0_i32_0 : i32, i32, i32
  }
  func.func @transform_14(%arg0: i32, %arg1: i32, %arg2: i32) -> (i32, i32, i32) {
    %c2_i32 = arith.constant 2 : i32
    %0 = arith.muli %arg0, %c2_i32 : i32
    %1 = arith.addi %0, %arg2 : i32
    %c0_i32 = arith.constant 0 : i32
    %c0_i32_0 = arith.constant 0 : i32
    %c0_i32_1 = arith.constant 0 : i32
    return %1, %c0_i32, %c0_i32_0 : i32, i32, i32
  }
}

</mosaic_0001>

<llo_original>
// kernel: tpu_custom_call.1
$region0: #{tpu_custom_call.1}
  #allocation0 [shape = 'u32[]', space=smem, size = 0x4, offset = 0x4, fixed_abs, tag = 'smem constant byte address 0x4 - core index']
  #allocation1 [shape = 'u32[144,128]{1,0:T(1,128)}', space=vmem, size = 0x12000, scoped, tag = 'internal scratch']
  #allocation2 [shape = 'f32[2,8,32]{2,1,0:T(8,128)}', space=vmem, size = 0x2000, scoped, tag = 'scratch operand']
  #allocation3 [shape = 'f32[8,32]{1,0:T(8,128)}', space=vmem, size = 0x1000, scoped, tag = 'scratch operand']
  %s0 = inlined_call_operand.hbm [shape: f32[32,32], index: 0, kind: input, shape index: {}]
  %s1 = inlined_call_operand.hbm [shape: f32[4,1,8], index: 1, kind: input, shape index: {}]
  %s2 = inlined_call_operand.hbm [shape: bf16[2,32,96], index: 2, kind: input, shape index: {}]
  %s3 = inlined_call_operand.hbm [shape: f32[2,1,96], index: 3, kind: input, shape index: {}]
  %s4 = inlined_call_operand.hbm [shape: bf16[2,32,32], index: 4, kind: input, shape index: {}]
  %s5 = inlined_call_operand.hbm [shape: f32[2,1,32], index: 5, kind: input, shape index: {}]
  %s6 = inlined_call_operand.hbm [shape: f32[2,1,32], index: 6, kind: input, shape index: {}]
  %s7 = inlined_call_operand.hbm [shape: f32[2,1,32], index: 7, kind: input, shape index: {}]
  %s8 = inlined_call_operand.hbm [shape: bf16[2,32,64], index: 8, kind: input, shape index: {}]
  %s9 = inlined_call_operand.hbm [shape: f32[2,1,64], index: 9, kind: input, shape index: {}]
  %s10 = inlined_call_operand.hbm [shape: bf16[2,64,32], index: 10, kind: input, shape index: {}]
  %s11 = inlined_call_operand.hbm [shape: f32[2,1,32], index: 11, kind: input, shape index: {}]
  %s12 = inlined_call_operand.hbm [shape: f32[2,1,32], index: 12, kind: input, shape index: {}]
  %s13 = inlined_call_operand.hbm [shape: f32[2,1,32], index: 13, kind: input, shape index: {}]
  %s14 = inlined_call_operand.hbm [shape: f32[4,1,32], index: 14, kind: output, shape index: {}]
  %s15 = sld [smem:[#allocation0]]
  $region149: #{tpu_custom_call.1} parent=0
    _
  %s17 = ssub.s32 1, %s15
  %s18 = scalar_select 0, %s17, %s15
  $region1: #{tpu_custom_call.1} parent=0
    #allocation4 [shape = 'u8[8192]{0}', space=vmem, size = 0x2000, scoped, tag = 'input window, operand 0']
    #allocation5 [shape = 's32[2]{0}', space=sflag, size = 0x8, scoped, tag = 'scoped memory for tpu_custom_call.1']
    #allocation6 [shape = 's32[2]{0}', space=sflag, size = 0x8, scoped, tag = 'scoped memory for tpu_custom_call.1']
    #allocation7 [shape = 'u8[1024]{0}', space=vmem, size = 0x400, scoped, tag = 'input window, operand 1']
    #allocation8 [shape = 's32[2]{0}', space=sflag, size = 0x8, scoped, tag = 'scoped memory for tpu_custom_call.1']
    #allocation9 [shape = 'u8[16384]{0}', space=vmem, size = 0x4000, scoped, tag = 'input window, operand 2']
    #allocation10 [shape = 'u8[1024]{0}', space=vmem, size = 0x400, scoped, tag = 'input window, operand 3']
    #allocation11 [shape = 's32[2]{0}', space=sflag, size = 0x8, scoped, tag = 'scoped memory for tpu_custom_call.1']
    #allocation12 [shape = 'u8[16384]{0}', space=vmem, size = 0x4000, scoped, tag = 'input window, operand 4']
    #allocation13 [shape = 'u8[1024]{0}', space=vmem, size = 0x400, scoped, tag = 'input window, operand 5']
    #allocation14 [shape = 's32[2]{0}', space=sflag, size = 0x8, scoped, tag = 'scoped memory for tpu_custom_call.1']
    #allocation15 [shape = 'u8[1024]{0}', space=vmem, size = 0x400, scoped, tag = 'input window, operand 6']
    #allocation16 [shape = 'u8[1024]{0}', space=vmem, size = 0x400, scoped, tag = 'input window, operand 7']
    #allocation17 [shape = 's32[2]{0}', space=sflag, size = 0x8, scoped, tag = 'scoped memory for tpu_custom_call.1']
    #allocation18 [shape = 'u8[16384]{0}', space=vmem, size = 0x4000, scoped, tag = 'input window, operand 8']
    #allocation19 [shape = 'u8[1024]{0}', space=vmem, size = 0x400, scoped, tag = 'input window, operand 9']
    #allocation20 [shape = 's32[2]{0}', space=sflag, size = 0x8, scoped, tag = 'scoped memory for tpu_custom_call.1']
    #allocation21 [shape = 'u8[32768]{0}', space=vmem, size = 0x8000, scoped, tag = 'input window, operand 10']
    #allocation22 [shape = 'u8[1024]{0}', space=vmem, size = 0x400, scoped, tag = 'input window, operand 11']
    #allocation23 [shape = 's32[2]{0}', space=sflag, size = 0x8, scoped, tag = 'scoped memory for tpu_custom_call.1']
    #allocation24 [shape = 'u8[1024]{0}', space=vmem, size = 0x400, scoped, tag = 'input window, operand 12']
    #allocation25 [shape = 'u8[1024]{0}', space=vmem, size = 0x400, scoped, tag = 'input window, operand 13']
    #allocation26 [shape = 's32[2]{0}', space=sflag, size = 0x8, scoped, tag = 'scoped memory for tpu_custom_call.1']
    #allocation27 [shape = 'u8[1024]{0}', space=vmem, size = 0x400, scoped, tag = 'output window, operand 0']
    %19 = vsyncpa [#allocation5], 0
    %s20 = scalar_lea.sflag [#allocation5], 1
    %21 = vsyncpa %s20, 0
    %22 = vsyncpa [#allocation8], 0
    %s23 = scalar_lea.sflag [#allocation8], 1
    %24 = vsyncpa %s23, 0
    %25 = vsyncpa [#allocation11], 0
    %s26 = scalar_lea.sflag [#allocation11], 1
    %27 = vsyncpa %s26, 0
    %28 = vsyncpa [#allocation14], 0
    %s29 = scalar_lea.sflag [#allocation14], 1
    %30 = vsyncpa %s29, 0
    %31 = vsyncpa [#allocation17], 0
    %s32 = scalar_lea.sflag [#allocation17], 1
    %33 = vsyncpa %s32, 0
    %34 = vsyncpa [#allocation20], 0
    %s35 = scalar_lea.sflag [#allocation20], 1
    %36 = vsyncpa %s35, 0
    %37 = vsyncpa [#allocation23], 0
    %s38 = scalar_lea.sflag [#allocation23], 1
    %39 = vsyncpa %s38, 0
    %40 = vsyncpa [#allocation26], 0
    %s41 = scalar_lea.sflag [#allocation26], 1
    %42 = vsyncpa %s41, 0
    %43 = vsyncpa [#allocation6], 0
    %s44 = scalar_lea.sflag [#allocation6], 1
    %45 = vsyncpa %s44, 0
    loop: start=0, step=1, limit=10
    $region2: #{tpu_custom_call.1} parent=1 // loop_pre_header
      _
    $region3: #{tpu_custom_call.1} parent=1 // loop_header
      %s47 = sphi 0, %s51
      %p48 = scmp.ge.s32.totalorder %s47, 10
      %s54 = sphi 0, %s73
      %s55 = sphi 0, %s69
      %s56 = sphi 0, %s65
      %s57 = sphi 0, %s54
      %s58 = sphi 0, %s55
      %s59 = sphi 0, %s56
      %s60 = sphi 0, %s57
      %s61 = sphi 0, %s58
      %s62 = sphi 0, %s59
      %s80 = sphi 0, %s82
      %s83 = sphi 0, %s80
      %s84 = sphi 0, %s83
      %s100 = sphi 0, %s84
      %s110 = sphi 0, %s112
      %s113 = sphi 0, %s110
      %s114 = sphi 0, %s113
      %s130 = sphi 0, %s114
      %s136 = sphi 0, %s138
      %s139 = sphi 0, %s136
      %s140 = sphi 0, %s139
      %s156 = sphi 0, %s140
      %s162 = sphi 0, %s164
      %s165 = sphi 0, %s162
      %s166 = sphi 0, %s165
      %s182 = sphi 0, %s166
      %s188 = sphi 0, %s190
      %s191 = sphi 0, %s188
      %s192 = sphi 0, %s191
      %s208 = sphi 0, %s192
      %s214 = sphi 0, %s216
      %s217 = sphi 0, %s214
      %s218 = sphi 0, %s217
      %s234 = sphi 0, %s218
      %s240 = sphi 0, %s242
      %s243 = sphi 0, %s240
      %s244 = sphi 0, %s243
      %s260 = sphi 0, %s244
      %s266 = sphi 0, %s268
      %s269 = sphi 0, %s266
      %s270 = sphi 0, %s269
      %s286 = sphi 0, %s270
      %s292 = sphi 0, %s294
      %s295 = sphi 0, %s292
      %s296 = sphi 0, %s295
      %s312 = sphi 0, %s296
      %s318 = sphi 0, %s320
      %s321 = sphi 0, %s318
      %s322 = sphi 0, %s321
      %s338 = sphi 0, %s322
      %s344 = sphi 0, %s346
      %s347 = sphi 0, %s344
      %s348 = sphi 0, %s347
      %s364 = sphi 0, %s348
      %s370 = sphi 0, %s372
      %s373 = sphi 0, %s370
      %s374 = sphi 0, %s373
      %s390 = sphi 0, %s374
      %s396 = sphi 0, %s398
      %s399 = sphi 0, %s396
      %s400 = sphi 0, %s399
      %s416 = sphi 0, %s400
      %s422 = sphi 0, %s424
      %s425 = sphi 0, %s422
      %s426 = sphi 0, %s425
      %s442 = sphi 0, %s426
      %s452 = sphi 0, %s454
      %s455 = sphi 0, %s452
      %s456 = sphi 0, %s455
      %s472 = sphi 0, %s456
    $region4: #{tpu_custom_call.1} parent=1 // loop_header_branch
      %50 = sbr.rel (%p48) target = $region8
    $region5: #{tpu_custom_call.1} parent=1 // loop_body
      %s52 = ssub.s32 %s47, 1
      %s53 = ssub.s32 %s47, 2
      %s63 = sadd.s32 1, %s56
      %p64 = scmp.ge.s32.totalorder %s63, 2
      %s65 = scalar_select %p64, 0, %s63
      %s66 = sadd.s32 1, %s55
      %s67 = scalar_select %p64, %s66, %s55
      %p68 = scmp.ge.s32.totalorder %s67, 2
      %s69 = scalar_select %p68, 0, %s67
      %s70 = sadd.s32 1, %s54
      %s71 = scalar_select %p68, %s70, %s54
      %p72 = scmp.ge.s32.totalorder %s71, 2
      %s73 = scalar_select %p72, 0, %s71
      %s74 = smul.u32 %s54, 2
      %s75 = sadd.s32 %s74, %s56
      %s76 = smul.u32 %s73, 2
      %s77 = sadd.s32 %s76, %s65
      %s78 = ssub.s32 %s75, %s77
      %p79 = scmp.eq.s32.totalorder %s78, 0
      %s81 = sadd.s32 %s80, 1
      %s82 = scalar_select %p79, %s80, %s81
      %p85 = pneg %p79
      %p86 = scmp.eq.s32.totalorder %s47, 7
      %p87 = por %p85, %p86
      %p88 = scmp.ne.s32.totalorder %s80, %s83
      %p89 = scmp.eq.s32.totalorder %s47, 0
      %p90 = por %p88, %p89
      %p91 = scmp.ne.s32.totalorder %s80, %s83
      %p92 = scmp.eq.s32.totalorder %s52, 7
      %p93 = por %p91, %p92
      %p94 = scmp.ne.s32.totalorder %s83, %s84
      %p95 = scmp.eq.s32.totalorder %s52, 0
      %p96 = por %p94, %p95
      %p97 = scmp.ne.s32.totalorder %s83, %s84
      %p98 = scmp.eq.s32.totalorder %s53, 7
      %p99 = por %p97, %p98
      %p101 = scmp.ne.s32.totalorder %s84, %s100
      %p102 = scmp.eq.s32.totalorder %s53, 0
      %p103 = por %p101, %p102
      %s104 = smul.u32 %s54, 2
      %s105 = sadd.s32 %s104, %s56
      %s106 = smul.u32 %s73, 2
      %s107 = sadd.s32 %s106, %s65
      %s108 = ssub.s32 %s105, %s107
      %p109 = scmp.eq.s32.totalorder %s108, 0
      %s111 = sadd.s32 %s110, 1
      %s112 = scalar_select %p109, %s110, %s111
      %p115 = pneg %p109
      %p116 = scmp.eq.s32.totalorder %s47, 7
      %p117 = por %p115, %p116
      %p118 = scmp.ne.s32.totalorder %s110, %s113
      %p119 = scmp.eq.s32.totalorder %s47, 0
      %p120 = por %p118, %p119
      %p121 = scmp.ne.s32.totalorder %s110, %s113
      %p122 = scmp.eq.s32.totalorder %s52, 7
      %p123 = por %p121, %p122
      %p124 = scmp.ne.s32.totalorder %s113, %s114
      %p125 = scmp.eq.s32.totalorder %s52, 0
      %p126 = por %p124, %p125
      %p127 = scmp.ne.s32.totalorder %s113, %s114
      %p128 = scmp.eq.s32.totalorder %s53, 7
      %p129 = por %p127, %p128
      %p131 = scmp.ne.s32.totalorder %s114, %s130
      %p132 = scmp.eq.s32.totalorder %s53, 0
      %p133 = por %p131, %p132
      %s134 = ssub.s32 %s55, %s69
      %p135 = scmp.eq.s32.totalorder %s134, 0
      %s137 = sadd.s32 %s136, 1
      %s138 = scalar_select %p135, %s136, %s137
      %p141 = pneg %p135
      %p142 = scmp.eq.s32.totalorder %s47, 7
      %p143 = por %p141, %p142
      %p144 = scmp.ne.s32.totalorder %s136, %s139
      %p145 = scmp.eq.s32.totalorder %s47, 0
      %p146 = por %p144, %p145
      %p147 = scmp.ne.s32.totalorder %s136, %s139
      %p148 = scmp.eq.s32.totalorder %s52, 7
      %p149 = por %p147, %p148
      %p150 = scmp.ne.s32.totalorder %s139, %s140
      %p151 = scmp.eq.s32.totalorder %s52, 0
      %p152 = por %p150, %p151
      %p153 = scmp.ne.s32.totalorder %s139, %s140
      %p154 = scmp.eq.s32.totalorder %s53, 7
      %p155 = por %p153, %p154
      %p157 = scmp.ne.s32.totalorder %s140, %s156
      %p158 = scmp.eq.s32.totalorder %s53, 0
      %p159 = por %p157, %p158
      %s160 = ssub.s32 %s55, %s69
      %p161 = scmp.eq.s32.totalorder %s160, 0
      %s163 = sadd.s32 %s162, 1
      %s164 = scalar_select %p161, %s162, %s163
      %p167 = pneg %p161
      %p168 = scmp.eq.s32.totalorder %s47, 7
      %p169 = por %p167, %p168
      %p170 = scmp.ne.s32.totalorder %s162, %s165
      %p171 = scmp.eq.s32.totalorder %s47, 0
      %p172 = por %p170, %p171
      %p173 = scmp.ne.s32.totalorder %s162, %s165
      %p174 = scmp.eq.s32.totalorder %s52, 7
      %p175 = por %p173, %p174
      %p176 = scmp.ne.s32.totalorder %s165, %s166
      %p177 = scmp.eq.s32.totalorder %s52, 0
      %p178 = por %p176, %p177
      %p179 = scmp.ne.s32.totalorder %s165, %s166
      %p180 = scmp.eq.s32.totalorder %s53, 7
      %p181 = por %p179, %p180
      %p183 = scmp.ne.s32.totalorder %s166, %s182
      %p184 = scmp.eq.s32.totalorder %s53, 0
      %p185 = por %p183, %p184
      %s186 = ssub.s32 %s55, %s69
      %p187 = scmp.eq.s32.totalorder %s186, 0
      %s189 = sadd.s32 %s188, 1
      %s190 = scalar_select %p187, %s188, %s189
      %p193 = pneg %p187
      %p194 = scmp.eq.s32.totalorder %s47, 7
      %p195 = por %p193, %p194
      %p196 = scmp.ne.s32.totalorder %s188, %s191
      %p197 = scmp.eq.s32.totalorder %s47, 0
      %p198 = por %p196, %p197
      %p199 = scmp.ne.s32.totalorder %s188, %s191
      %p200 = scmp.eq.s32.totalorder %s52, 7
      %p201 = por %p199, %p200
      %p202 = scmp.ne.s32.totalorder %s191, %s192
      %p203 = scmp.eq.s32.totalorder %s52, 0
      %p204 = por %p202, %p203
      %p205 = scmp.ne.s32.totalorder %s191, %s192
      %p206 = scmp.eq.s32.totalorder %s53, 7
      %p207 = por %p205, %p206
      %p209 = scmp.ne.s32.totalorder %s192, %s208
      %p210 = scmp.eq.s32.totalorder %s53, 0
      %p211 = por %p209, %p210
      %s212 = ssub.s32 %s55, %s69
      %p213 = scmp.eq.s32.totalorder %s212, 0
      %s215 = sadd.s32 %s214, 1
      %s216 = scalar_select %p213, %s214, %s215
      %p219 = pneg %p213
      %p220 = scmp.eq.s32.totalorder %s47, 7
      %p221 = por %p219, %p220
      %p222 = scmp.ne.s32.totalorder %s214, %s217
      %p223 = scmp.eq.s32.totalorder %s47, 0
      %p224 = por %p222, %p223
      %p225 = scmp.ne.s32.totalorder %s214, %s217
      %p226 = scmp.eq.s32.totalorder %s52, 7
      %p227 = por %p225, %p226
      %p228 = scmp.ne.s32.totalorder %s217, %s218
      %p229 = scmp.eq.s32.totalorder %s52, 0
      %p230 = por %p228, %p229
      %p231 = scmp.ne.s32.totalorder %s217, %s218
      %p232 = scmp.eq.s32.totalorder %s53, 7
      %p233 = por %p231, %p232
      %p235 = scmp.ne.s32.totalorder %s218, %s234
      %p236 = scmp.eq.s32.totalorder %s53, 0
      %p237 = por %p235, %p236
      %s238 = ssub.s32 %s55, %s69
      %p239 = scmp.eq.s32.totalorder %s238, 0
      %s241 = sadd.s32 %s240, 1
      %s242 = scalar_select %p239, %s240, %s241
      %p245 = pneg %p239
      %p246 = scmp.eq.s32.totalorder %s47, 7
      %p247 = por %p245, %p246
      %p248 = scmp.ne.s32.totalorder %s240, %s243
      %p249 = scmp.eq.s32.totalorder %s47, 0
      %p250 = por %p248, %p249
      %p251 = scmp.ne.s32.totalorder %s240, %s243
      %p252 = scmp.eq.s32.totalorder %s52, 7
      %p253 = por %p251, %p252
      %p254 = scmp.ne.s32.totalorder %s243, %s244
      %p255 = scmp.eq.s32.totalorder %s52, 0
      %p256 = por %p254, %p255
      %p257 = scmp.ne.s32.totalorder %s243, %s244
      %p258 = scmp.eq.s32.totalorder %s53, 7
      %p259 = por %p257, %p258
      %p261 = scmp.ne.s32.totalorder %s244, %s260
      %p262 = scmp.eq.s32.totalorder %s53, 0
      %p263 = por %p261, %p262
      %s264 = ssub.s32 %s55, %s69
      %p265 = scmp.eq.s32.totalorder %s264, 0
      %s267 = sadd.s32 %s266, 1
      %s268 = scalar_select %p265, %s266, %s267
      %p271 = pneg %p265
      %p272 = scmp.eq.s32.totalorder %s47, 7
      %p273 = por %p271, %p272
      %p274 = scmp.ne.s32.totalorder %s266, %s269
      %p275 = scmp.eq.s32.totalorder %s47, 0
      %p276 = por %p274, %p275
      %p277 = scmp.ne.s32.totalorder %s266, %s269
      %p278 = scmp.eq.s32.totalorder %s52, 7
      %p279 = por %p277, %p278
      %p280 = scmp.ne.s32.totalorder %s269, %s270
      %p281 = scmp.eq.s32.totalorder %s52, 0
      %p282 = por %p280, %p281
      %p283 = scmp.ne.s32.totalorder %s269, %s270
      %p284 = scmp.eq.s32.totalorder %s53, 7
      %p285 = por %p283, %p284
      %p287 = scmp.ne.s32.totalorder %s270, %s286
      %p288 = scmp.eq.s32.totalorder %s53, 0
      %p289 = por %p287, %p288
      %s290 = ssub.s32 %s55, %s69
      %p291 = scmp.eq.s32.totalorder %s290, 0
      %s293 = sadd.s32 %s292, 1
      %s294 = scalar_select %p291, %s292, %s293
      %p297 = pneg %p291
      %p298 = scmp.eq.s32.totalorder %s47, 7
      %p299 = por %p297, %p298
      %p300 = scmp.ne.s32.totalorder %s292, %s295
      %p301 = scmp.eq.s32.totalorder %s47, 0
      %p302 = por %p300, %p301
      %p303 = scmp.ne.s32.totalorder %s292, %s295
      %p304 = scmp.eq.s32.totalorder %s52, 7
      %p305 = por %p303, %p304
      %p306 = scmp.ne.s32.totalorder %s295, %s296
      %p307 = scmp.eq.s32.totalorder %s52, 0
      %p308 = por %p306, %p307
      %p309 = scmp.ne.s32.totalorder %s295, %s296
      %p310 = scmp.eq.s32.totalorder %s53, 7
      %p311 = por %p309, %p310
      %p313 = scmp.ne.s32.totalorder %s296, %s312
      %p314 = scmp.eq.s32.totalorder %s53, 0
      %p315 = por %p313, %p314
      %s316 = ssub.s32 %s55, %s69
      %p317 = scmp.eq.s32.totalorder %s316, 0
      %s319 = sadd.s32 %s318, 1
      %s320 = scalar_select %p317, %s318, %s319
      %p323 = pneg %p317
      %p324 = scmp.eq.s32.totalorder %s47, 7
      %p325 = por %p323, %p324
      %p326 = scmp.ne.s32.totalorder %s318, %s321
      %p327 = scmp.eq.s32.totalorder %s47, 0
      %p328 = por %p326, %p327
      %p329 = scmp.ne.s32.totalorder %s318, %s321
      %p330 = scmp.eq.s32.totalorder %s52, 7
      %p331 = por %p329, %p330
      %p332 = scmp.ne.s32.totalorder %s321, %s322
      %p333 = scmp.eq.s32.totalorder %s52, 0
      %p334 = por %p332, %p333
      %p335 = scmp.ne.s32.totalorder %s321, %s322
      %p336 = scmp.eq.s32.totalorder %s53, 7
      %p337 = por %p335, %p336
      %p339 = scmp.ne.s32.totalorder %s322, %s338
      %p340 = scmp.eq.s32.totalorder %s53, 0
      %p341 = por %p339, %p340
      %s342 = ssub.s32 %s55, %s69
      %p343 = scmp.eq.s32.totalorder %s342, 0
      %s345 = sadd.s32 %s344, 1
      %s346 = scalar_select %p343, %s344, %s345
      %p349 = pneg %p343
      %p350 = scmp.eq.s32.totalorder %s47, 7
      %p351 = por %p349, %p350
      %p352 = scmp.ne.s32.totalorder %s344, %s347
      %p353 = scmp.eq.s32.totalorder %s47, 0
      %p354 = por %p352, %p353
      %p355 = scmp.ne.s32.totalorder %s344, %s347
      %p356 = scmp.eq.s32.totalorder %s52, 7
      %p357 = por %p355, %p356
      %p358 = scmp.ne.s32.totalorder %s347, %s348
      %p359 = scmp.eq.s32.totalorder %s52, 0
      %p360 = por %p358, %p359
      %p361 = scmp.ne.s32.totalorder %s347, %s348
      %p362 = scmp.eq.s32.totalorder %s53, 7
      %p363 = por %p361, %p362
      %p365 = scmp.ne.s32.totalorder %s348, %s364
      %p366 = scmp.eq.s32.totalorder %s53, 0
      %p367 = por %p365, %p366
      %s368 = ssub.s32 %s55, %s69
      %p369 = scmp.eq.s32.totalorder %s368, 0
      %s371 = sadd.s32 %s370, 1
      %s372 = scalar_select %p369, %s370, %s371
      %p375 = pneg %p369
      %p376 = scmp.eq.s32.totalorder %s47, 7
      %p377 = por %p375, %p376
      %p378 = scmp.ne.s32.totalorder %s370, %s373
      %p379 = scmp.eq.s32.totalorder %s47, 0
      %p380 = por %p378, %p379
      %p381 = scmp.ne.s32.totalorder %s370, %s373
      %p382 = scmp.eq.s32.totalorder %s52, 7
      %p383 = por %p381, %p382
      %p384 = scmp.ne.s32.totalorder %s373, %s374
      %p385 = scmp.eq.s32.totalorder %s52, 0
      %p386 = por %p384, %p385
      %p387 = scmp.ne.s32.totalorder %s373, %s374
      %p388 = scmp.eq.s32.totalorder %s53, 7
      %p389 = por %p387, %p388
      %p391 = scmp.ne.s32.totalorder %s374, %s390
      %p392 = scmp.eq.s32.totalorder %s53, 0
      %p393 = por %p391, %p392
      %s394 = ssub.s32 %s55, %s69
      %p395 = scmp.eq.s32.totalorder %s394, 0
      %s397 = sadd.s32 %s396, 1
      %s398 = scalar_select %p395, %s396, %s397
      %p401 = pneg %p395
      %p402 = scmp.eq.s32.totalorder %s47, 7
      %p403 = por %p401, %p402
      %p404 = scmp.ne.s32.totalorder %s396, %s399
      %p405 = scmp.eq.s32.totalorder %s47, 0
      %p406 = por %p404, %p405
      %p407 = scmp.ne.s32.totalorder %s396, %s399
      %p408 = scmp.eq.s32.totalorder %s52, 7
      %p409 = por %p407, %p408
      %p410 = scmp.ne.s32.totalorder %s399, %s400
      %p411 = scmp.eq.s32.totalorder %s52, 0
      %p412 = por %p410, %p411
      %p413 = scmp.ne.s32.totalorder %s399, %s400
      %p414 = scmp.eq.s32.totalorder %s53, 7
      %p415 = por %p413, %p414
      %p417 = scmp.ne.s32.totalorder %s400, %s416
      %p418 = scmp.eq.s32.totalorder %s53, 0
      %p419 = por %p417, %p418
      %s420 = ssub.s32 %s55, %s69
      %p421 = scmp.eq.s32.totalorder %s420, 0
      %s423 = sadd.s32 %s422, 1
      %s424 = scalar_select %p421, %s422, %s423
      %p427 = pneg %p421
      %p428 = scmp.eq.s32.totalorder %s47, 7
      %p429 = por %p427, %p428
      %p430 = scmp.ne.s32.totalorder %s422, %s425
      %p431 = scmp.eq.s32.totalorder %s47, 0
      %p432 = por %p430, %p431
      %p433 = scmp.ne.s32.totalorder %s422, %s425
      %p434 = scmp.eq.s32.totalorder %s52, 7
      %p435 = por %p433, %p434
      %p436 = scmp.ne.s32.totalorder %s425, %s426
      %p437 = scmp.eq.s32.totalorder %s52, 0
      %p438 = por %p436, %p437
      %p439 = scmp.ne.s32.totalorder %s425, %s426
      %p440 = scmp.eq.s32.totalorder %s53, 7
      %p441 = por %p439, %p440
      %p443 = scmp.ne.s32.totalorder %s426, %s442
      %p444 = scmp.eq.s32.totalorder %s53, 0
      %p445 = por %p443, %p444
      %s446 = smul.u32 %s54, 2
      %s447 = sadd.s32 %s446, %s56
      %s448 = smul.u32 %s73, 2
      %s449 = sadd.s32 %s448, %s65
      %s450 = ssub.s32 %s447, %s449
      %p451 = scmp.eq.s32.totalorder %s450, 0
      %s453 = sadd.s32 %s452, 1
      %s454 = scalar_select %p451, %s452, %s453
      %p457 = pneg %p451
      %p458 = scmp.eq.s32.totalorder %s47, 7
      %p459 = por %p457, %p458
      %p460 = scmp.ne.s32.totalorder %s452, %s455
      %p461 = scmp.eq.s32.totalorder %s47, 0
      %p462 = por %p460, %p461
      %p463 = scmp.ne.s32.totalorder %s452, %s455
      %p464 = scmp.eq.s32.totalorder %s52, 7
      %p465 = por %p463, %p464
      %p466 = scmp.ne.s32.totalorder %s455, %s456
      %p467 = scmp.eq.s32.totalorder %s52, 0
      %p468 = por %p466, %p467
      %p469 = scmp.ne.s32.totalorder %s455, %s456
      %p470 = scmp.eq.s32.totalorder %s53, 7
      %p471 = por %p469, %p470
      %p473 = scmp.ne.s32.totalorder %s456, %s472
      %p474 = scmp.eq.s32.totalorder %s53, 0
      %p475 = por %p473, %p474
      %p476 = scmp.le.s32.totalorder 1, %s47
      %p477 = scmp.lt.s32.totalorder %s47, 9
      %p478 = pnand %p476, %p477
      %p479 = pneg %p478
      // Predicated region
      $region9: #{tpu_custom_call.1} parent=5 // pred_check
        _
      $region10: #{tpu_custom_call.1} parent=5 // pred_check_branch
        %481 = sbr.rel (%p478) target = $region12
      $region11: #{tpu_custom_call.1} parent=5 // pred_region
        %s482 = ssub.s32 %s47, 1
      $region12: #{tpu_custom_call.1} parent=5 // pred_fallthru
        _
      %p483 = scmp.lt.s32.totalorder %s47, 8
      // Predicated region
      $region13: #{tpu_custom_call.1} parent=5 // pred_check
        %p484 = pneg %p483
      $region14: #{tpu_custom_call.1} parent=5 // pred_check_branch
        %486 = sbr.rel (%p484) target = $region16
      $region15: #{tpu_custom_call.1} parent=5 // pred_region
        // Predicated region
        $region17: #{tpu_custom_call.1} parent=15 // pred_check
          %p487 = pneg %p90
        $region18: #{tpu_custom_call.1} parent=15 // pred_check_branch
          %489 = sbr.rel (%p487) target = $region20
        $region19: #{tpu_custom_call.1} parent=15 // pred_region
          %s490 = sand.u32 %s80, 1
          %s491 = scalar_lea.sflag [#allocation5], %s490
          %s492 = sand.u32 %s80, 1
          %s493 = smul.addr %s492, 8
          %s494 = scalar_lea.vmem [#allocation4], %s493
          %s495 = smul.u32 %s54, 2
          %s496 = sadd.s32 %s495, %s56
          %s498 = ssub.s32 128, 128
          %499 = vsyncadd %s491, %s498
          %s500 = smul.addr %s496, 128
          %s501 = scalar_lea.hbm %s0, %s500
          %s503 = sshll.u32 %s494, 4
          %s504 = int_to_ptr.vmem [resolvable:$true] %s503
          %506 = dma.hbm_to_vmem [thread:$0]  %s501, 128, %s504, %s491
        $region20: #{tpu_custom_call.1} parent=15 // pred_fallthru
          _
        // Predicated region
        $region21: #{tpu_custom_call.1} parent=15 // pred_check
          %p507 = pneg %p120
        $region22: #{tpu_custom_call.1} parent=15 // pred_check_branch
          %509 = sbr.rel (%p507) target = $region24
        $region23: #{tpu_custom_call.1} parent=15 // pred_region
          %s510 = sand.u32 %s47, 1
          %s511 = scalar_lea.sflag [#allocation8], %s510
          %s512 = sand.u32 %s110, 1
          %s513 = scalar_lea.vmem [#allocation7], %s512
          %s514 = smul.u32 %s54, 2
          %s515 = sadd.s32 %s514, %s56
          %s517 = ssub.s32 16, 16
          %518 = vsyncadd %s511, %s517
          %s519 = smul.addr %s515, 16
          %s520 = scalar_lea.hbm %s1, %s519
          %s522 = sshll.u32 %s513, 4
          %s523 = int_to_ptr.vmem [resolvable:$true] %s522
          %525 = dma.hbm_to_vmem [thread:$0]  %s520, 16, %s523, %s511
        $region24: #{tpu_custom_call.1} parent=15 // pred_fallthru
          _
        // Predicated region
        $region25: #{tpu_custom_call.1} parent=15 // pred_check
          %p526 = pneg %p146
        $region26: #{tpu_custom_call.1} parent=15 // pred_check_branch
          %528 = sbr.rel (%p526) target = $region28
        $region27: #{tpu_custom_call.1} parent=15 // pred_region
          %s529 = sand.u32 %s47, 1
          %s530 = scalar_lea.sflag [#allocation8], %s529
          %s531 = sand.u32 %s136, 1
          %s532 = smul.addr %s531, 16
          %s533 = scalar_lea.vmem [#allocation9], %s532
          %s535 = ssub.s32 256, 256
          %536 = vsyncadd %s530, %s535
          %s537 = smul.addr %s55, 4
          %s538 = smul.addr %s537, 64
          %s539 = scalar_lea.hbm %s2, %s538
          %s540 = sshll.u32 %s533, 4
          %s541 = int_to_ptr.vmem [resolvable:$true] %s540
          %546 = dma.hbm_to_vmem [thread:$0]  %s539, 256, %s541, %s530, 64, 64, 4
        $region28: #{tpu_custom_call.1} parent=15 // pred_fallthru
          _
        // Predicated region
        $region29: #{tpu_custom_call.1} parent=15 // pred_check
          %p547 = pneg %p172
        $region30: #{tpu_custom_call.1} parent=15 // pred_check_branch
          %549 = sbr.rel (%p547) target = $region32
        $region31: #{tpu_custom_call.1} parent=15 // pred_region
          %s550 = sand.u32 %s47, 1
          %s551 = scalar_lea.sflag [#allocation11], %s550
          %s552 = sand.u32 %s162, 1
          %s553 = scalar_lea.vmem [#allocation10], %s552
          %s555 = ssub.s32 16, 16
          %556 = vsyncadd %s551, %s555
          %s557 = smul.addr %s55, 16
          %s558 = scalar_lea.hbm %s3, %s557
          %s560 = sshll.u32 %s553, 4
          %s561 = int_to_ptr.vmem [resolvable:$true] %s560
          %563 = dma.hbm_to_vmem [thread:$0]  %s558, 16, %s561, %s551
        $region32: #{tpu_custom_call.1} parent=15 // pred_fallthru
          _
        // Predicated region
        $region33: #{tpu_custom_call.1} parent=15 // pred_check
          %p564 = pneg %p198
        $region34: #{tpu_custom_call.1} parent=15 // pred_check_branch
          %566 = sbr.rel (%p564) target = $region36
        $region35: #{tpu_custom_call.1} parent=15 // pred_region
          %s567 = sand.u32 %s47, 1
          %s568 = scalar_lea.sflag [#allocation11], %s567
          %s569 = sand.u32 %s188, 1
          %s570 = smul.addr %s569, 16
          %s571 = scalar_lea.vmem [#allocation12], %s570
          %s573 = ssub.s32 256, 256
          %574 = vsyncadd %s568, %s573
          %s575 = smul.addr %s55, 4
          %s576 = smul.addr %s575, 64
          %s577 = scalar_lea.hbm %s4, %s576
          %s578 = sshll.u32 %s571, 4
          %s579 = int_to_ptr.vmem [resolvable:$true] %s578
          %584 = dma.hbm_to_vmem [thread:$0]  %s577, 256, %s579, %s568, 64, 64, 4
        $region36: #{tpu_custom_call.1} parent=15 // pred_fallthru
          _
        // Predicated region
        $region37: #{tpu_custom_call.1} parent=15 // pred_check
          %p585 = pneg %p224
        $region38: #{tpu_custom_call.1} parent=15 // pred_check_branch
          %587 = sbr.rel (%p585) target = $region40
        $region39: #{tpu_custom_call.1} parent=15 // pred_region
          %s588 = sand.u32 %s47, 1
          %s589 = scalar_lea.sflag [#allocation14], %s588
          %s590 = sand.u32 %s214, 1
          %s591 = scalar_lea.vmem [#allocation13], %s590
          %s593 = ssub.s32 16, 16
          %594 = vsyncadd %s589, %s593
          %s595 = smul.addr %s55, 16
          %s596 = scalar_lea.hbm %s5, %s595
          %s598 = sshll.u32 %s591, 4
          %s599 = int_to_ptr.vmem [resolvable:$true] %s598
          %601 = dma.hbm_to_vmem [thread:$0]  %s596, 16, %s599, %s589
        $region40: #{tpu_custom_call.1} parent=15 // pred_fallthru
          _
        // Predicated region
        $region41: #{tpu_custom_call.1} parent=15 // pred_check
          %p602 = pneg %p250
        $region42: #{tpu_custom_call.1} parent=15 // pred_check_branch
          %604 = sbr.rel (%p602) target = $region44
        $region43: #{tpu_custom_call.1} parent=15 // pred_region
          %s605 = sand.u32 %s47, 1
          %s606 = scalar_lea.sflag [#allocation14], %s605
          %s607 = sand.u32 %s240, 1
          %s608 = scalar_lea.vmem [#allocation15], %s607
          %s610 = ssub.s32 16, 16
          %611 = vsyncadd %s606, %s610
          %s612 = smul.addr %s55, 16
          %s613 = scalar_lea.hbm %s6, %s612
          %s615 = sshll.u32 %s608, 4
          %s616 = int_to_ptr.vmem [resolvable:$true] %s615
          %618 = dma.hbm_to_vmem [thread:$0]  %s613, 16, %s616, %s606
        $region44: #{tpu_custom_call.1} parent=15 // pred_fallthru
          _
        // Predicated region
        $region45: #{tpu_custom_call.1} parent=15 // pred_check
          %p619 = pneg %p276
        $region46: #{tpu_custom_call.1} parent=15 // pred_check_branch
          %621 = sbr.rel (%p619) target = $region48
        $region47: #{tpu_custom_call.1} parent=15 // pred_region
          %s622 = sand.u32 %s47, 1
          %s623 = scalar_lea.sflag [#allocation17], %s622
          %s624 = sand.u32 %s266, 1
          %s625 = scalar_lea.vmem [#allocation16], %s624
          %s627 = ssub.s32 16, 16
          %628 = vsyncadd %s623, %s627
          %s629 = smul.addr %s55, 16
          %s630 = scalar_lea.hbm %s7, %s629
          %s632 = sshll.u32 %s625, 4
          %s633 = int_to_ptr.vmem [resolvable:$true] %s632
          %635 = dma.hbm_to_vmem [thread:$0]  %s630, 16, %s633, %s623
        $region48: #{tpu_custom_call.1} parent=15 // pred_fallthru
          _
        // Predicated region
        $region49: #{tpu_custom_call.1} parent=15 // pred_check
          %p636 = pneg %p302
        $region50: #{tpu_custom_call.1} parent=15 // pred_check_branch
          %638 = sbr.rel (%p636) target = $region52
        $region51: #{tpu_custom_call.1} parent=15 // pred_region
          %s639 = sand.u32 %s47, 1
          %s640 = scalar_lea.sflag [#allocation17], %s639
          %s641 = sand.u32 %s292, 1
          %s642 = smul.addr %s641, 16
          %s643 = scalar_lea.vmem [#allocation18], %s642
          %s645 = ssub.s32 256, 256
          %646 = vsyncadd %s640, %s645
          %s647 = smul.addr %s55, 4
          %s648 = smul.addr %s647, 64
          %s649 = scalar_lea.hbm %s8, %s648
          %s650 = sshll.u32 %s643, 4
          %s651 = int_to_ptr.vmem [resolvable:$true] %s650
          %656 = dma.hbm_to_vmem [thread:$0]  %s649, 256, %s651, %s640, 64, 64, 4
        $region52: #{tpu_custom_call.1} parent=15 // pred_fallthru
          _
        // Predicated region
        $region53: #{tpu_custom_call.1} parent=15 // pred_check
          %p657 = pneg %p328
        $region54: #{tpu_custom_call.1} parent=15 // pred_check_branch
          %659 = sbr.rel (%p657) target = $region56
        $region55: #{tpu_custom_call.1} parent=15 // pred_region
          %s660 = sand.u32 %s47, 1
          %s661 = scalar_lea.sflag [#allocation20], %s660
          %s662 = sand.u32 %s318, 1
          %s663 = scalar_lea.vmem [#allocation19], %s662
          %s665 = ssub.s32 16, 16
          %666 = vsyncadd %s661, %s665
          %s667 = smul.addr %s55, 16
          %s668 = scalar_lea.hbm %s9, %s667
          %s670 = sshll.u32 %s663, 4
          %s671 = int_to_ptr.vmem [resolvable:$true] %s670
          %673 = dma.hbm_to_vmem [thread:$0]  %s668, 16, %s671, %s661
        $region56: #{tpu_custom_call.1} parent=15 // pred_fallthru
          _
        // Predicated region
        $region57: #{tpu_custom_call.1} parent=15 // pred_check
          %p674 = pneg %p354
        $region58: #{tpu_custom_call.1} parent=15 // pred_check_branch
          %676 = sbr.rel (%p674) target = $region60
        $region59: #{tpu_custom_call.1} parent=15 // pred_region
          %s677 = sand.u32 %s47, 1
          %s678 = scalar_lea.sflag [#allocation20], %s677
          %s679 = sand.u32 %s344, 1
          %s680 = smul.addr %s679, 32
          %s681 = scalar_lea.vmem [#allocation21], %s680
          %s683 = ssub.s32 512, 512
          %684 = vsyncadd %s678, %s683
          %s685 = smul.addr %s55, 8
          %s686 = smul.addr %s685, 64
          %s687 = scalar_lea.hbm %s10, %s686
          %s688 = sshll.u32 %s681, 4
          %s689 = int_to_ptr.vmem [resolvable:$true] %s688
          %694 = dma.hbm_to_vmem [thread:$0]  %s687, 512, %s689, %s678, 64, 64, 4
        $region60: #{tpu_custom_call.1} parent=15 // pred_fallthru
          _
        // Predicated region
        $region61: #{tpu_custom_call.1} parent=15 // pred_check
          %p695 = pneg %p380
        $region62: #{tpu_custom_call.1} parent=15 // pred_check_branch
          %697 = sbr.rel (%p695) target = $region64
        $region63: #{tpu_custom_call.1} parent=15 // pred_region
          %s698 = sand.u32 %s47, 1
          %s699 = scalar_lea.sflag [#allocation23], %s698
          %s700 = sand.u32 %s370, 1
          %s701 = scalar_lea.vmem [#allocation22], %s700
          %s703 = ssub.s32 16, 16
          %704 = vsyncadd %s699, %s703
          %s705 = smul.addr %s55, 16
          %s706 = scalar_lea.hbm %s11, %s705
          %s708 = sshll.u32 %s701, 4
          %s709 = int_to_ptr.vmem [resolvable:$true] %s708
          %711 = dma.hbm_to_vmem [thread:$0]  %s706, 16, %s709, %s699
        $region64: #{tpu_custom_call.1} parent=15 // pred_fallthru
          _
        // Predicated region
        $region65: #{tpu_custom_call.1} parent=15 // pred_check
          %p712 = pneg %p406
        $region66: #{tpu_custom_call.1} parent=15 // pred_check_branch
          %714 = sbr.rel (%p712) target = $region68
        $region67: #{tpu_custom_call.1} parent=15 // pred_region
          %s715 = sand.u32 %s47, 1
          %s716 = scalar_lea.sflag [#allocation23], %s715
          %s717 = sand.u32 %s396, 1
          %s718 = scalar_lea.vmem [#allocation24], %s717
          %s720 = ssub.s32 16, 16
          %721 = vsyncadd %s716, %s720
          %s722 = smul.addr %s55, 16
          %s723 = scalar_lea.hbm %s12, %s722
          %s725 = sshll.u32 %s718, 4
          %s726 = int_to_ptr.vmem [resolvable:$true] %s725
          %728 = dma.hbm_to_vmem [thread:$0]  %s723, 16, %s726, %s716
        $region68: #{tpu_custom_call.1} parent=15 // pred_fallthru
          _
        // Predicated region
        $region69: #{tpu_custom_call.1} parent=15 // pred_check
          %p729 = pneg %p432
        $region70: #{tpu_custom_call.1} parent=15 // pred_check_branch
          %731 = sbr.rel (%p729) target = $region72
        $region71: #{tpu_custom_call.1} parent=15 // pred_region
          %s732 = sand.u32 %s422, 1
          %s733 = scalar_lea.sflag [#allocation26], %s732
          %s734 = sand.u32 %s422, 1
          %s735 = scalar_lea.vmem [#allocation25], %s734
          %s737 = ssub.s32 16, 16
          %738 = vsyncadd %s733, %s737
          %s739 = smul.addr %s55, 16
          %s740 = scalar_lea.hbm %s13, %s739
          %s742 = sshll.u32 %s735, 4
          %s743 = int_to_ptr.vmem [resolvable:$true] %s742
          %745 = dma.hbm_to_vmem [thread:$0]  %s740, 16, %s743, %s733
        $region72: #{tpu_custom_call.1} parent=15 // pred_fallthru
          _
      $region16: #{tpu_custom_call.1} parent=5 // pred_fallthru
        _
      %p746 = scmp.le.s32.totalorder 1, %s47
      %p747 = scmp.lt.s32.totalorder %s47, 9
      %p748 = pnand %p746, %p747
      %p749 = pneg %p748
      // Predicated region
      $region73: #{tpu_custom_call.1} parent=5 // pred_check
        _
      $region74: #{tpu_custom_call.1} parent=5 // pred_check_branch
        %751 = sbr.rel (%p748) target = $region76
      $region75: #{tpu_custom_call.1} parent=5 // pred_region
        %s752 = ssub.s32 %s47, 1
        %s753 = sand.u32 %s83, 1
        %s754 = scalar_lea.sflag [#allocation5], %s753
        %s755 = sand.u32 %s83, 1
        %s756 = smul.addr %s755, 8
        %s757 = scalar_lea.vmem [#allocation4], %s756
        // Predicated region
        $region77: #{tpu_custom_call.1} parent=75 // pred_check
          %p758 = pneg %p96
        $region78: #{tpu_custom_call.1} parent=75 // pred_check_branch
          %760 = sbr.rel (%p758) target = $region80
        $region79: #{tpu_custom_call.1} parent=75 // pred_region
          %761 = dma.done %s754, 128
        $region80: #{tpu_custom_call.1} parent=75 // pred_fallthru
          _
        %s762 = sand.u32 %s52, 1
        %s763 = scalar_lea.sflag [#allocation8], %s762
        %s764 = sand.u32 %s113, 1
        %s765 = scalar_lea.vmem [#allocation7], %s764
        // Predicated region
        $region81: #{tpu_custom_call.1} parent=75 // pred_check
          %p766 = pneg %p126
        $region82: #{tpu_custom_call.1} parent=75 // pred_check_branch
          %768 = sbr.rel (%p766) target = $region84
        $region83: #{tpu_custom_call.1} parent=75 // pred_region
          %769 = dma.done %s763, 16
        $region84: #{tpu_custom_call.1} parent=75 // pred_fallthru
          _
        %s770 = sand.u32 %s52, 1
        %s771 = scalar_lea.sflag [#allocation8], %s770
        %s772 = sand.u32 %s139, 1
        %s773 = smul.addr %s772, 16
        %s774 = scalar_lea.vmem [#allocation9], %s773
        // Predicated region
        $region85: #{tpu_custom_call.1} parent=75 // pred_check
          %p775 = pneg %p152
        $region86: #{tpu_custom_call.1} parent=75 // pred_check_branch
          %777 = sbr.rel (%p775) target = $region88
        $region87: #{tpu_custom_call.1} parent=75 // pred_region
          %778 = dma.done %s771, 256
        $region88: #{tpu_custom_call.1} parent=75 // pred_fallthru
          _
        %s779 = sand.u32 %s52, 1
        %s780 = scalar_lea.sflag [#allocation11], %s779
        %s781 = sand.u32 %s165, 1
        %s782 = scalar_lea.vmem [#allocation10], %s781
        // Predicated region
        $region89: #{tpu_custom_call.1} parent=75 // pred_check
          %p783 = pneg %p178
        $region90: #{tpu_custom_call.1} parent=75 // pred_check_branch
          %785 = sbr.rel (%p783) target = $region92
        $region91: #{tpu_custom_call.1} parent=75 // pred_region
          %786 = dma.done %s780, 16
        $region92: #{tpu_custom_call.1} parent=75 // pred_fallthru
          _
        %s787 = sand.u32 %s52, 1
        %s788 = scalar_lea.sflag [#allocation11], %s787
        %s789 = sand.u32 %s191, 1
        %s790 = smul.addr %s789, 16
        %s791 = scalar_lea.vmem [#allocation12], %s790
        // Predicated region
        $region93: #{tpu_custom_call.1} parent=75 // pred_check
          %p792 = pneg %p204
        $region94: #{tpu_custom_call.1} parent=75 // pred_check_branch
          %794 = sbr.rel (%p792) target = $region96
        $region95: #{tpu_custom_call.1} parent=75 // pred_region
          %795 = dma.done %s788, 256
        $region96: #{tpu_custom_call.1} parent=75 // pred_fallthru
          _
        %s796 = sand.u32 %s52, 1
        %s797 = scalar_lea.sflag [#allocation14], %s796
        %s798 = sand.u32 %s217, 1
        %s799 = scalar_lea.vmem [#allocation13], %s798
        // Predicated region
        $region97: #{tpu_custom_call.1} parent=75 // pred_check
          %p800 = pneg %p230
        $region98: #{tpu_custom_call.1} parent=75 // pred_check_branch
          %802 = sbr.rel (%p800) target = $region100
        $region99: #{tpu_custom_call.1} parent=75 // pred_region
          %803 = dma.done %s797, 16
        $region100: #{tpu_custom_call.1} parent=75 // pred_fallthru
          _
        %s804 = sand.u32 %s52, 1
        %s805 = scalar_lea.sflag [#allocation14], %s804
        %s806 = sand.u32 %s243, 1
        %s807 = scalar_lea.vmem [#allocation15], %s806
        // Predicated region
        $region101: #{tpu_custom_call.1} parent=75 // pred_check
          %p808 = pneg %p256
        $region102: #{tpu_custom_call.1} parent=75 // pred_check_branch
          %810 = sbr.rel (%p808) target = $region104
        $region103: #{tpu_custom_call.1} parent=75 // pred_region
          %811 = dma.done %s805, 16
        $region104: #{tpu_custom_call.1} parent=75 // pred_fallthru
          _
        %s812 = sand.u32 %s52, 1
        %s813 = scalar_lea.sflag [#allocation17], %s812
        %s814 = sand.u32 %s269, 1
        %s815 = scalar_lea.vmem [#allocation16], %s814
        // Predicated region
        $region105: #{tpu_custom_call.1} parent=75 // pred_check
          %p816 = pneg %p282
        $region106: #{tpu_custom_call.1} parent=75 // pred_check_branch
          %818 = sbr.rel (%p816) target = $region108
        $region107: #{tpu_custom_call.1} parent=75 // pred_region
          %819 = dma.done %s813, 16
        $region108: #{tpu_custom_call.1} parent=75 // pred_fallthru
          _
        %s820 = sand.u32 %s52, 1
        %s821 = scalar_lea.sflag [#allocation17], %s820
        %s822 = sand.u32 %s295, 1
        %s823 = smul.addr %s822, 16
        %s824 = scalar_lea.vmem [#allocation18], %s823
        // Predicated region
        $region109: #{tpu_custom_call.1} parent=75 // pred_check
          %p825 = pneg %p308
        $region110: #{tpu_custom_call.1} parent=75 // pred_check_branch
          %827 = sbr.rel (%p825) target = $region112
        $region111: #{tpu_custom_call.1} parent=75 // pred_region
          %828 = dma.done %s821, 256
        $region112: #{tpu_custom_call.1} parent=75 // pred_fallthru
          _
        %s829 = sand.u32 %s52, 1
        %s830 = scalar_lea.sflag [#allocation20], %s829
        %s831 = sand.u32 %s321, 1
        %s832 = scalar_lea.vmem [#allocation19], %s831
        // Predicated region
        $region113: #{tpu_custom_call.1} parent=75 // pred_check
          %p833 = pneg %p334
        $region114: #{tpu_custom_call.1} parent=75 // pred_check_branch
          %835 = sbr.rel (%p833) target = $region116
        $region115: #{tpu_custom_call.1} parent=75 // pred_region
          %836 = dma.done %s830, 16
        $region116: #{tpu_custom_call.1} parent=75 // pred_fallthru
          _
        %s837 = sand.u32 %s52, 1
        %s838 = scalar_lea.sflag [#allocation20], %s837
        %s839 = sand.u32 %s347, 1
        %s840 = smul.addr %s839, 32
        %s841 = scalar_lea.vmem [#allocation21], %s840
        // Predicated region
        $region117: #{tpu_custom_call.1} parent=75 // pred_check
          %p842 = pneg %p360
        $region118: #{tpu_custom_call.1} parent=75 // pred_check_branch
          %844 = sbr.rel (%p842) target = $region120
        $region119: #{tpu_custom_call.1} parent=75 // pred_region
          %845 = dma.done %s838, 512
        $region120: #{tpu_custom_call.1} parent=75 // pred_fallthru
          _
        %s846 = sand.u32 %s52, 1
        %s847 = scalar_lea.sflag [#allocation23], %s846
        %s848 = sand.u32 %s373, 1
        %s849 = scalar_lea.vmem [#allocation22], %s848
        // Predicated region
        $region121: #{tpu_custom_call.1} parent=75 // pred_check
          %p850 = pneg %p386
        $region122: #{tpu_custom_call.1} parent=75 // pred_check_branch
          %852 = sbr.rel (%p850) target = $region124
        $region123: #{tpu_custom_call.1} parent=75 // pred_region
          %853 = dma.done %s847, 16
        $region124: #{tpu_custom_call.1} parent=75 // pred_fallthru
          _
        %s854 = sand.u32 %s52, 1
        %s855 = scalar_lea.sflag [#allocation23], %s854
        %s856 = sand.u32 %s399, 1
        %s857 = scalar_lea.vmem [#allocation24], %s856
        // Predicated region
        $region125: #{tpu_custom_call.1} parent=75 // pred_check
          %p858 = pneg %p412
        $region126: #{tpu_custom_call.1} parent=75 // pred_check_branch
          %860 = sbr.rel (%p858) target = $region128
        $region127: #{tpu_custom_call.1} parent=75 // pred_region
          %861 = dma.done %s855, 16
        $region128: #{tpu_custom_call.1} parent=75 // pred_fallthru
          _
        %s862 = sand.u32 %s425, 1
        %s863 = scalar_lea.sflag [#allocation26], %s862
        %s864 = sand.u32 %s425, 1
        %s865 = scalar_lea.vmem [#allocation25], %s864
        // Predicated region
        $region129: #{tpu_custom_call.1} parent=75 // pred_check
          %p866 = pneg %p438
        $region130: #{tpu_custom_call.1} parent=75 // pred_check_branch
          %868 = sbr.rel (%p866) target = $region132
        $region131: #{tpu_custom_call.1} parent=75 // pred_region
          %869 = dma.done %s863, 16
        $region132: #{tpu_custom_call.1} parent=75 // pred_fallthru
          _
        %s870 = sand.u32 %s83, 1
        %s871 = scalar_lea.sflag [#allocation5], %s870
        %s872 = sand.u32 %s83, 1
        %s873 = smul.addr %s872, 8
        %s874 = scalar_lea.vmem [#allocation4], %s873
        %p875 = pneg %p96
        %p876 = pneg %p93
        %s877 = sand.u32 %s52, 1
        %s878 = scalar_lea.sflag [#allocation8], %s877
        %s879 = sand.u32 %s113, 1
        %s880 = scalar_lea.vmem [#allocation7], %s879
        %p881 = pneg %p126
        %p882 = pneg %p123
        %s883 = sand.u32 %s52, 1
        %s884 = scalar_lea.sflag [#allocation8], %s883
        %s885 = sand.u32 %s139, 1
        %s886 = smul.addr %s885, 16
        %s887 = scalar_lea.vmem [#allocation9], %s886
        %p888 = pneg %p152
        %p889 = pneg %p149
        %s890 = sand.u32 %s52, 1
        %s891 = scalar_lea.sflag [#allocation11], %s890
        %s892 = sand.u32 %s165, 1
        %s893 = scalar_lea.vmem [#allocation10], %s892
        %p894 = pneg %p178
        %p895 = pneg %p175
        %s896 = sand.u32 %s52, 1
        %s897 = scalar_lea.sflag [#allocation11], %s896
        %s898 = sand.u32 %s191, 1
        %s899 = smul.addr %s898, 16
        %s900 = scalar_lea.vmem [#allocation12], %s899
        %p901 = pneg %p204
        %p902 = pneg %p201
        %s903 = sand.u32 %s52, 1
        %s904 = scalar_lea.sflag [#allocation14], %s903
        %s905 = sand.u32 %s217, 1
        %s906 = scalar_lea.vmem [#allocation13], %s905
        %p907 = pneg %p230
        %p908 = pneg %p227
        %s909 = sand.u32 %s52, 1
        %s910 = scalar_lea.sflag [#allocation14], %s909
        %s911 = sand.u32 %s243, 1
        %s912 = scalar_lea.vmem [#allocation15], %s911
        %p913 = pneg %p256
        %p914 = pneg %p253
        %s915 = sand.u32 %s52, 1
        %s916 = scalar_lea.sflag [#allocation17], %s915
        %s917 = sand.u32 %s269, 1
        %s918 = scalar_lea.vmem [#allocation16], %s917
        %p919 = pneg %p282
        %p920 = pneg %p279
        %s921 = sand.u32 %s52, 1
        %s922 = scalar_lea.sflag [#allocation17], %s921
        %s923 = sand.u32 %s295, 1
        %s924 = smul.addr %s923, 16
        %s925 = scalar_lea.vmem [#allocation18], %s924
        %p926 = pneg %p308
        %p927 = pneg %p305
        %s928 = sand.u32 %s52, 1
        %s929 = scalar_lea.sflag [#allocation20], %s928
        %s930 = sand.u32 %s321, 1
        %s931 = scalar_lea.vmem [#allocation19], %s930
        %p932 = pneg %p334
        %p933 = pneg %p331
        %s934 = sand.u32 %s52, 1
        %s935 = scalar_lea.sflag [#allocation20], %s934
        %s936 = sand.u32 %s347, 1
        %s937 = smul.addr %s936, 32
        %s938 = scalar_lea.vmem [#allocation21], %s937
        %p939 = pneg %p360
        %p940 = pneg %p357
        %s941 = sand.u32 %s52, 1
        %s942 = scalar_lea.sflag [#allocation23], %s941
        %s943 = sand.u32 %s373, 1
        %s944 = scalar_lea.vmem [#allocation22], %s943
        %p945 = pneg %p386
        %p946 = pneg %p383
        %s947 = sand.u32 %s52, 1
        %s948 = scalar_lea.sflag [#allocation23], %s947
        %s949 = sand.u32 %s399, 1
        %s950 = scalar_lea.vmem [#allocation24], %s949
        %p951 = pneg %p412
        %p952 = pneg %p409
        %s953 = sand.u32 %s425, 1
        %s954 = scalar_lea.sflag [#allocation26], %s953
        %s955 = sand.u32 %s425, 1
        %s956 = scalar_lea.vmem [#allocation25], %s955
        %p957 = pneg %p438
        %p958 = pneg %p435
        %p959 = pneg %p468
        %p960 = pneg %p465
        %s961 = sand.u32 %s455, 1
        %s962 = scalar_lea.sflag [#allocation6], %s961
        %s963 = sand.u32 %s455, 1
        %s964 = scalar_lea.vmem [#allocation27], %s963
        %s965 = smul.u32 %s57, 2
        %s966 = sadd.s32 %s965, %s59
        %s967 = smul.u32 %s57, 2
        %s968 = sadd.s32 %s967, %s59
        %s969 = smul.u32 %s57, 2
        %s970 = sadd.s32 %s969, %s59
        %p972 = scmp.eq.s32.totalorder %s58, 0
        // Predicated region
        $region133: #{tpu_custom_call.1} parent=75 // pred_check
          %p973 = pneg %p972
        $region134: #{tpu_custom_call.1} parent=75 // pred_check_branch
          %975 = sbr.rel (%p973) target = $region136
        $region135: #{tpu_custom_call.1} parent=75 // pred_region
          %v976 = vld [vmem:[%s757] sm:$0xff]
          %s977 = smul.u32 %s59, 8
          %s978 = scalar_lea.vmem [#allocation2], %s977
          %vm979 = vcmask 261120
          %980 = vst.msk [vmem:[%s978] sm:$0xff] %vm979, %v976
        $region136: #{tpu_custom_call.1} parent=75 // pred_fallthru
          _
        %s981 = smul.u32 %s59, 8
        %s982 = scalar_lea.vmem [#allocation2], %s981
        %v983 = vld [vmem:[%s982] sm:$0xff]
        %v984 = vpack.c.bf16 %v983, %v983
        %v985 = vld [vmem:[%s774] sm:$0xf]
        %v986 = vld [vmem:[%s774 + $0x4] sm:$0xf]
        %v987 = vld [vmem:[%s774 + $0x8] sm:$0xf]
        %v988 = vld [vmem:[%s774 + $0xc] sm:$0xf]
        %v989 = vld [vmem:[%s782] sm:$0x1]
        %v991 = vlaneseq
        %v992 = vshrl.u32 %v991, 7
        %v993 = vsub.s32 0, %v992
        %v994 = vrot.slane %v989, %v993
        %v1000 = vunpack.c.l.b16 %v985
        %v1001 = vunpack.c.l.b16 %v986
        %v1002 = vunpack.c.l.b16 %v987
        %v1003 = vunpack.c.l.b16 %v988
        %v1004 = vpack.c.b16 %v1001, %v1000
        %v1005 = vpack.c.b16 %v1003, %v1002
        %vm1008 = vcmask 261120
        %v1010 = vsel %vm1008, %v984, 0
        %1012 = vmatprep.subr.bf16.mxu0 0
        %1013 = vmatpush1.bf16.msra.mxu0 %v1004
        %1014 = vmatprep.subr.bf16.mxu0 0
        %1015 = vmatpush1.bf16.msra.mxu0 %v1005
        %1016 = vmatprep.subr.bf16.mxu0 0
        %1017 = vmatpush1.bf16.msra.mxu0 0
        %1018 = vmatprep.subr.bf16.mxu0 0
        %1019 = vmatpush1.bf16.msra.mxu0 0
        %1020 = vmatprep.subr.bf16.mxu0 0
        %1021 = vmatpush1.bf16.msra.mxu0 0
        %1022 = vmatprep.subr.bf16.mxu0 0
        %1023 = vmatpush1.bf16.msra.mxu0 0
        %1024 = vmatprep.subr.bf16.mxu0 0
        %1025 = vmatpush1.bf16.msra.mxu0 0
        %1026 = vmatprep.subr.bf16.mxu0 0
        %1027 = vmatpush1.bf16.msra.mxu0 0
        %1028 = vmatprep.subr.bf16.mxu0 0
        %1029 = vmatpush1.bf16.msra.mxu0 0
        %1030 = vmatprep.subr.bf16.mxu0 0
        %1031 = vmatpush1.bf16.msra.mxu0 0
        %1032 = vmatprep.subr.bf16.mxu0 0
        %1033 = vmatpush1.bf16.msra.mxu0 0
        %1034 = vmatprep.subr.bf16.mxu0 0
        %1035 = vmatpush1.bf16.msra.mxu0 0
        %1036 = vmatprep.subr.bf16.mxu0 0
        %1037 = vmatpush1.bf16.msra.mxu0 0
        %1038 = vmatprep.subr.bf16.mxu0 0
        %1039 = vmatpush1.bf16.msra.mxu0 0
        %1040 = vmatprep.subr.bf16.mxu0 0
        %1041 = vmatpush1.bf16.msra.mxu0 0
        %1042 = vmatprep.subr.bf16.mxu0 0
        %1043 = vmatpush1.bf16.msra.mxu0 0
        %1044 = vmatprep.mubr.bf16.mxu0 0
        %1045 = vmatmul.mubr.bf16.gmra.mrb[0].mxu0 %v1010
        %v1046 = vpop.f32.mrb[0].mxu0
        %v1047 = vadd.f32 %v994, %v1046
        %v1048 = vpop.f32.mrb[0].mxu0
        %v1049 = vpop.f32.mrb[0].mxu0
        %v1050 = vpop.f32.mrb[0].mxu0
        %1051 = vdwg.mxu0
        %v1052 = vmul.f32 %v1047, 0.35355338
        %v1053 = vld [vmem:[%s765] sm:$0x1]
        %v1055 = vlaneseq
        %v1056 = vshrl.u32 %v1055, 7
        %v1057 = vsub.s32 0, %v1056
        %v1058 = vrot.slane %v1053, %v1057
        %1061 = vrot.lane.b32.xlu0 %v1047, 96
        %v1062 = vpop.permute.xlu0 %1061
        %vm1063 = vcmask 64512
        %v1065 = vsel %vm1063, %v1052, 0
        %v1067 = vsel %vm1063, %v1062, 0
        %1069 = vmatprep.subr.mxu0 0.0
        %1070 = vmatpush1.xpose.msra.mxu0 %v1067
        %1071 = vmatprep.subr.mxu0 0.0
        %1072 = vmatpush1.xpose.msra.mxu0 0.0
        %1073 = vmatprep.subr.mxu0 0.0
        %1074 = vmatpush1.xpose.msra.mxu0 0.0
        %1075 = vmatprep.subr.mxu0 0.0
        %1076 = vmatpush1.xpose.msra.mxu0 0.0
        %1077 = vmatprep.subr.mxu0 0.0
        %1078 = vmatpush1.xpose.msra.mxu0 0.0
        %1079 = vmatprep.subr.mxu0 0.0
        %1080 = vmatpush1.xpose.msra.mxu0 0.0
        %1081 = vmatprep.subr.mxu0 0.0
        %1082 = vmatpush1.xpose.msra.mxu0 0.0
        %1083 = vmatprep.subr.mxu0 0.0
        %1084 = vmatpush1.xpose.msra.mxu0 0.0
        %1085 = vmatprep.subr.mxu0 0.0
        %1086 = vmatpush1.xpose.msra.mxu0 0.0
        %1087 = vmatprep.subr.mxu0 0.0
        %1088 = vmatpush1.xpose.msra.mxu0 0.0
        %1089 = vmatprep.subr.mxu0 0.0
        %1090 = vmatpush1.xpose.msra.mxu0 0.0
        %1091 = vmatprep.subr.mxu0 0.0
        %1092 = vmatpush1.xpose.msra.mxu0 0.0
        %1093 = vmatprep.subr.mxu0 0.0
        %1094 = vmatpush1.xpose.msra.mxu0 0.0
        %1095 = vmatprep.subr.mxu0 0.0
        %1096 = vmatpush1.xpose.msra.mxu0 0.0
        %1097 = vmatprep.subr.mxu0 0.0
        %1098 = vmatpush1.xpose.msra.mxu0 0.0
        %1099 = vmatprep.subr.mxu0 0.0
        %1100 = vmatpush1.xpose.msra.mxu0 0.0
        %1101 = vmatprep.subr.mxu0 0.0
        %1102 = vmatpush1.xpose.msra.mxu0 0.0
        %1103 = vmatprep.subr.mxu0 0.0
        %1104 = vmatpush1.xpose.msra.mxu0 0.0
        %1105 = vmatprep.subr.mxu0 0.0
        %1106 = vmatpush1.xpose.msra.mxu0 0.0
        %1107 = vmatprep.subr.mxu0 0.0
        %1108 = vmatpush1.xpose.msra.mxu0 0.0
        %1109 = vmatprep.subr.mxu0 0.0
        %1110 = vmatpush1.xpose.msra.mxu0 0.0
        %1111 = vmatprep.subr.mxu0 0.0
        %1112 = vmatpush1.xpose.msra.mxu0 0.0
        %1113 = vmatprep.subr.mxu0 0.0
        %1114 = vmatpush1.xpose.msra.mxu0 0.0
        %1115 = vmatprep.subr.mxu0 0.0
        %1116 = vmatpush1.xpose.msra.mxu0 0.0
        %1117 = vmatprep.subr.mxu0 0.0
        %1118 = vmatpush1.xpose.msra.mxu0 0.0
        %1119 = vmatprep.subr.mxu0 0.0
        %1120 = vmatpush1.xpose.msra.mxu0 0.0
        %1121 = vmatprep.subr.mxu0 0.0
        %1122 = vmatpush1.xpose.msra.mxu0 0.0
        %1123 = vmatprep.subr.mxu0 0.0
        %1124 = vmatpush1.xpose.msra.mxu0 0.0
        %1125 = vmatprep.subr.mxu0 0.0
        %1126 = vmatpush1.xpose.msra.mxu0 0.0
        %1127 = vmatprep.subr.mxu0 0.0
        %1128 = vmatpush1.xpose.msra.mxu0 0.0
        %1129 = vmatprep.subr.mxu0 0.0
        %1130 = vmatpush1.xpose.msra.mxu0 0.0
        %1131 = vmatprep.subr.mxu0 0.0
        %1132 = vmatpush1.xpose.msra.mxu0 0.0
        %1133 = vmatprep.mubr.f32.mxu0 0.0
        %1134 = vmatmul.mubr.f32.gmra.mrb[0].mxu0 %v1065
        %v1135 = vpop.f32.mrb[0].mxu0
        %v1136 = vadd.f32 %v1058, %v1135
        %v1137 = vpop.f32.mrb[0].mxu0
        %1138 = vdwg.mxu0
        %v1139 = vsel %vm1063, %v1136, -inf
        %1140 = vmax.xlane.f32.xlu0 %v1139
        %v1141 = vpop.xlane.xlu0 %1140
        %v1142 = vsub.f32 %v1136, %v1141
        %v1143 = vmul.f32 %v1142, 1.442695
        %v1144 = vpow.pop %v1143
        %v1145 = vsel %vm1063, %v1144, 0.0
        %1146 = vadd.xlane.f32.xlu0 %v1145
        %v1147 = vpop.xlane.xlu0 %1146
        %v1148 = vrcp.pop %v1147
        %v1149 = vmul.f32 %v1144, %v1148
        %v1150 = vpack.c.bf16 %v1149, %v1149
        %v1151 = vpack.c.bf16 %v1047, %v1047
        %1153 = vrot.lane.b32.xlu0 %v1151, 64
        %v1154 = vpop.permute.xlu0 %1153
        %v1156 = vsel %vm1063, %v1150, 0
        %vm1158 = vcmask 1043456
        %v1160 = vsel %vm1158, %v1154, 0
        %1162 = vmatprep.subr.bf16.mxu0 0
        %1163 = vmatpush1.bf16.msra.mxu0 %v1160
        %1164 = vmatprep.subr.bf16.mxu0 0
        %1165 = vmatpush1.bf16.msra.mxu0 0
        %1166 = vmatprep.subr.bf16.mxu0 0
        %1167 = vmatpush1.bf16.msra.mxu0 0
        %1168 = vmatprep.subr.bf16.mxu0 0
        %1169 = vmatpush1.bf16.msra.mxu0 0
        %1170 = vmatprep.subr.bf16.mxu0 0
        %1171 = vmatpush1.bf16.msra.mxu0 0
        %1172 = vmatprep.subr.bf16.mxu0 0
        %1173 = vmatpush1.bf16.msra.mxu0 0
        %1174 = vmatprep.subr.bf16.mxu0 0
        %1175 = vmatpush1.bf16.msra.mxu0 0
        %1176 = vmatprep.subr.bf16.mxu0 0
        %1177 = vmatpush1.bf16.msra.mxu0 0
        %1178 = vmatprep.subr.bf16.mxu0 0
        %1179 = vmatpush1.bf16.msra.mxu0 0
        %1180 = vmatprep.subr.bf16.mxu0 0
        %1181 = vmatpush1.bf16.msra.mxu0 0
        %1182 = vmatprep.subr.bf16.mxu0 0
        %1183 = vmatpush1.bf16.msra.mxu0 0
        %1184 = vmatprep.subr.bf16.mxu0 0
        %1185 = vmatpush1.bf16.msra.mxu0 0
        %1186 = vmatprep.subr.bf16.mxu0 0
        %1187 = vmatpush1.bf16.msra.mxu0 0
        %1188 = vmatprep.subr.bf16.mxu0 0
        %1189 = vmatpush1.bf16.msra.mxu0 0
        %1190 = vmatprep.subr.bf16.mxu0 0
        %1191 = vmatpush1.bf16.msra.mxu0 0
        %1192 = vmatprep.subr.bf16.mxu0 0
        %1193 = vmatpush1.bf16.msra.mxu0 0
        %1194 = vmatprep.mubr.bf16.mxu0 0
        %1195 = vmatmul.mubr.bf16.gmra.mrb[0].mxu0 %v1156
        %v1196 = vpop.f32.mrb[0].mxu0
        %v1197 = vadd.f32 0.0, %v1196
        %v1198 = vpop.f32.mrb[0].mxu0
        %v1199 = vpop.f32.mrb[0].mxu0
        %v1200 = vpop.f32.mrb[0].mxu0
        %1201 = vdwg.mxu0
        %1202 = vst.msk [vmem:[#allocation3] sm:$0xff] %vm1063, %v1197
        %1203 = vrot.lane.b32.xlu0 %v1052, 120
        %v1204 = vpop.permute.xlu0 %1203
        %1205 = vrot.lane.b32.xlu0 %v1047, 88
        %v1206 = vpop.permute.xlu0 %1205
        %v1207 = vsel %vm1063, %v1204, 0
        %v1209 = vsel %vm1063, %v1206, 0
        %1211 = vmatprep.subr.mxu0 0.0
        %1212 = vmatpush1.xpose.msra.mxu0 %v1209
        %1213 = vmatprep.subr.mxu0 0.0
        %1214 = vmatpush1.xpose.msra.mxu0 0.0
        %1215 = vmatprep.subr.mxu0 0.0
        %1216 = vmatpush1.xpose.msra.mxu0 0.0
        %1217 = vmatprep.subr.mxu0 0.0
        %1218 = vmatpush1.xpose.msra.mxu0 0.0
        %1219 = vmatprep.subr.mxu0 0.0
        %1220 = vmatpush1.xpose.msra.mxu0 0.0
        %1221 = vmatprep.subr.mxu0 0.0
        %1222 = vmatpush1.xpose.msra.mxu0 0.0
        %1223 = vmatprep.subr.mxu0 0.0
        %1224 = vmatpush1.xpose.msra.mxu0 0.0
        %1225 = vmatprep.subr.mxu0 0.0
        %1226 = vmatpush1.xpose.msra.mxu0 0.0
        %1227 = vmatprep.subr.mxu0 0.0
        %1228 = vmatpush1.xpose.msra.mxu0 0.0
        %1229 = vmatprep.subr.mxu0 0.0
        %1230 = vmatpush1.xpose.msra.mxu0 0.0
        %1231 = vmatprep.subr.mxu0 0.0
        %1232 = vmatpush1.xpose.msra.mxu0 0.0
        %1233 = vmatprep.subr.mxu0 0.0
        %1234 = vmatpush1.xpose.msra.mxu0 0.0
        %1235 = vmatprep.subr.mxu0 0.0
        %1236 = vmatpush1.xpose.msra.mxu0 0.0
        %1237 = vmatprep.subr.mxu0 0.0
        %1238 = vmatpush1.xpose.msra.mxu0 0.0
        %1239 = vmatprep.subr.mxu0 0.0
        %1240 = vmatpush1.xpose.msra.mxu0 0.0
        %1241 = vmatprep.subr.mxu0 0.0
        %1242 = vmatpush1.xpose.msra.mxu0 0.0
        %1243 = vmatprep.subr.mxu0 0.0
        %1244 = vmatpush1.xpose.msra.mxu0 0.0
        %1245 = vmatprep.subr.mxu0 0.0
        %1246 = vmatpush1.xpose.msra.mxu0 0.0
        %1247 = vmatprep.subr.mxu0 0.0
        %1248 = vmatpush1.xpose.msra.mxu0 0.0
        %1249 = vmatprep.subr.mxu0 0.0
        %1250 = vmatpush1.xpose.msra.mxu0 0.0
        %1251 = vmatprep.subr.mxu0 0.0
        %1252 = vmatpush1.xpose.msra.mxu0 0.0
        %1253 = vmatprep.subr.mxu0 0.0
        %1254 = vmatpush1.xpose.msra.mxu0 0.0
        %1255 = vmatprep.subr.mxu0 0.0
        %1256 = vmatpush1.xpose.msra.mxu0 0.0
        %1257 = vmatprep.subr.mxu0 0.0
        %1258 = vmatpush1.xpose.msra.mxu0 0.0
        %1259 = vmatprep.subr.mxu0 0.0
        %1260 = vmatpush1.xpose.msra.mxu0 0.0
        %1261 = vmatprep.subr.mxu0 0.0
        %1262 = vmatpush1.xpose.msra.mxu0 0.0
        %1263 = vmatprep.subr.mxu0 0.0
        %1264 = vmatpush1.xpose.msra.mxu0 0.0
        %1265 = vmatprep.subr.mxu0 0.0
        %1266 = vmatpush1.xpose.msra.mxu0 0.0
        %1267 = vmatprep.subr.mxu0 0.0
        %1268 = vmatpush1.xpose.msra.mxu0 0.0
        %1269 = vmatprep.subr.mxu0 0.0
        %1270 = vmatpush1.xpose.msra.mxu0 0.0
        %1271 = vmatprep.subr.mxu0 0.0
        %1272 = vmatpush1.xpose.msra.mxu0 0.0
        %1273 = vmatprep.subr.mxu0 0.0
        %1274 = vmatpush1.xpose.msra.mxu0 0.0
        %1275 = vmatprep.mubr.f32.mxu0 0.0
        %1276 = vmatmul.mubr.f32.gmra.mrb[0].mxu0 %v1207
        %v1277 = vpop.f32.mrb[0].mxu0
        %v1278 = vadd.f32 %v1058, %v1277
        %v1279 = vpop.f32.mrb[0].mxu0
        %1280 = vdwg.mxu0
        %v1281 = vsel %vm1063, %v1278, -inf
        %1282 = vmax.xlane.f32.xlu0 %v1281
        %v1283 = vpop.xlane.xlu0 %1282
        %v1284 = vsub.f32 %v1278, %v1283
        %v1285 = vmul.f32 %v1284, 1.442695
        %v1286 = vpow.pop %v1285
        %v1287 = vsel %vm1063, %v1286, 0.0
        %1288 = vadd.xlane.f32.xlu0 %v1287
        %v1289 = vpop.xlane.xlu0 %1288
        %v1290 = vrcp.pop %v1289
        %v1291 = vmul.f32 %v1286, %v1290
        %v1292 = vpack.c.bf16 %v1291, %v1291
        %1293 = vrot.lane.b32.xlu0 %v1151, 56
        %v1294 = vpop.permute.xlu0 %1293
        %v1296 = vsel %vm1063, %v1292, 0
        %v1299 = vsel %vm1158, %v1294, 0
        %1301 = vmatprep.subr.bf16.mxu0 0
        %1302 = vmatpush1.bf16.msra.mxu0 %v1299
        %1303 = vmatprep.subr.bf16.mxu0 0
        %1304 = vmatpush1.bf16.msra.mxu0 0
        %1305 = vmatprep.subr.bf16.mxu0 0
        %1306 = vmatpush1.bf16.msra.mxu0 0
        %1307 = vmatprep.subr.bf16.mxu0 0
        %1308 = vmatpush1.bf16.msra.mxu0 0
        %1309 = vmatprep.subr.bf16.mxu0 0
        %1310 = vmatpush1.bf16.msra.mxu0 0
        %1311 = vmatprep.subr.bf16.mxu0 0
        %1312 = vmatpush1.bf16.msra.mxu0 0
        %1313 = vmatprep.subr.bf16.mxu0 0
        %1314 = vmatpush1.bf16.msra.mxu0 0
        %1315 = vmatprep.subr.bf16.mxu0 0
        %1316 = vmatpush1.bf16.msra.mxu0 0
        %1317 = vmatprep.subr.bf16.mxu0 0
        %1318 = vmatpush1.bf16.msra.mxu0 0
        %1319 = vmatprep.subr.bf16.mxu0 0
        %1320 = vmatpush1.bf16.msra.mxu0 0
        %1321 = vmatprep.subr.bf16.mxu0 0
        %1322 = vmatpush1.bf16.msra.mxu0 0
        %1323 = vmatprep.subr.bf16.mxu0 0
        %1324 = vmatpush1.bf16.msra.mxu0 0
        %1325 = vmatprep.subr.bf16.mxu0 0
        %1326 = vmatpush1.bf16.msra.mxu0 0
        %1327 = vmatprep.subr.bf16.mxu0 0
        %1328 = vmatpush1.bf16.msra.mxu0 0
        %1329 = vmatprep.subr.bf16.mxu0 0
        %1330 = vmatpush1.bf16.msra.mxu0 0
        %1331 = vmatprep.subr.bf16.mxu0 0
        %1332 = vmatpush1.bf16.msra.mxu0 0
        %1333 = vmatprep.mubr.bf16.mxu0 0
        %1334 = vmatmul.mubr.bf16.gmra.mrb[0].mxu0 %v1296
        %v1335 = vpop.f32.mrb[0].mxu0
        %v1336 = vadd.f32 0.0, %v1335
        %v1337 = vpop.f32.mrb[0].mxu0
        %v1338 = vpop.f32.mrb[0].mxu0
        %v1339 = vpop.f32.mrb[0].mxu0
        %1340 = vdwg.mxu0
        %1342 = vrot.lane.b32.xlu0 %v1336, 8
        %v1343 = vpop.permute.xlu0 %1342
        %vm1345 = vcmask 130112
        %1346 = vst.msk [vmem:[#allocation3] sm:$0xff] %vm1345, %v1343
        %1347 = vrot.lane.b32.xlu0 %v1052, 112
        %v1348 = vpop.permute.xlu0 %1347
        %1349 = vrot.lane.b32.xlu0 %v1047, 80
        %v1350 = vpop.permute.xlu0 %1349
        %v1351 = vsel %vm1063, %v1348, 0
        %v1353 = vsel %vm1063, %v1350, 0
        %1355 = vmatprep.subr.mxu0 0.0
        %1356 = vmatpush1.xpose.msra.mxu0 %v1353
        %1357 = vmatprep.subr.mxu0 0.0
        %1358 = vmatpush1.xpose.msra.mxu0 0.0
        %1359 = vmatprep.subr.mxu0 0.0
        %1360 = vmatpush1.xpose.msra.mxu0 0.0
        %1361 = vmatprep.subr.mxu0 0.0
        %1362 = vmatpush1.xpose.msra.mxu0 0.0
        %1363 = vmatprep.subr.mxu0 0.0
        %1364 = vmatpush1.xpose.msra.mxu0 0.0
        %1365 = vmatprep.subr.mxu0 0.0
        %1366 = vmatpush1.xpose.msra.mxu0 0.0
        %1367 = vmatprep.subr.mxu0 0.0
        %1368 = vmatpush1.xpose.msra.mxu0 0.0
        %1369 = vmatprep.subr.mxu0 0.0
        %1370 = vmatpush1.xpose.msra.mxu0 0.0
        %1371 = vmatprep.subr.mxu0 0.0
        %1372 = vmatpush1.xpose.msra.mxu0 0.0
        %1373 = vmatprep.subr.mxu0 0.0
        %1374 = vmatpush1.xpose.msra.mxu0 0.0
        %1375 = vmatprep.subr.mxu0 0.0
        %1376 = vmatpush1.xpose.msra.mxu0 0.0
        %1377 = vmatprep.subr.mxu0 0.0
        %1378 = vmatpush1.xpose.msra.mxu0 0.0
        %1379 = vmatprep.subr.mxu0 0.0
        %1380 = vmatpush1.xpose.msra.mxu0 0.0
        %1381 = vmatprep.subr.mxu0 0.0
        %1382 = vmatpush1.xpose.msra.mxu0 0.0
        %1383 = vmatprep.subr.mxu0 0.0
        %1384 = vmatpush1.xpose.msra.mxu0 0.0
        %1385 = vmatprep.subr.mxu0 0.0
        %1386 = vmatpush1.xpose.msra.mxu0 0.0
        %1387 = vmatprep.subr.mxu0 0.0
        %1388 = vmatpush1.xpose.msra.mxu0 0.0
        %1389 = vmatprep.subr.mxu0 0.0
        %1390 = vmatpush1.xpose.msra.mxu0 0.0
        %1391 = vmatprep.subr.mxu0 0.0
        %1392 = vmatpush1.xpose.msra.mxu0 0.0
        %1393 = vmatprep.subr.mxu0 0.0
        %1394 = vmatpush1.xpose.msra.mxu0 0.0
        %1395 = vmatprep.subr.mxu0 0.0
        %1396 = vmatpush1.xpose.msra.mxu0 0.0
        %1397 = vmatprep.subr.mxu0 0.0
        %1398 = vmatpush1.xpose.msra.mxu0 0.0
        %1399 = vmatprep.subr.mxu0 0.0
        %1400 = vmatpush1.xpose.msra.mxu0 0.0
        %1401 = vmatprep.subr.mxu0 0.0
        %1402 = vmatpush1.xpose.msra.mxu0 0.0
        %1403 = vmatprep.subr.mxu0 0.0
        %1404 = vmatpush1.xpose.msra.mxu0 0.0
        %1405 = vmatprep.subr.mxu0 0.0
        %1406 = vmatpush1.xpose.msra.mxu0 0.0
        %1407 = vmatprep.subr.mxu0 0.0
        %1408 = vmatpush1.xpose.msra.mxu0 0.0
        %1409 = vmatprep.subr.mxu0 0.0
        %1410 = vmatpush1.xpose.msra.mxu0 0.0
        %1411 = vmatprep.subr.mxu0 0.0
        %1412 = vmatpush1.xpose.msra.mxu0 0.0
        %1413 = vmatprep.subr.mxu0 0.0
        %1414 = vmatpush1.xpose.msra.mxu0 0.0
        %1415 = vmatprep.subr.mxu0 0.0
        %1416 = vmatpush1.xpose.msra.mxu0 0.0
        %1417 = vmatprep.subr.mxu0 0.0
        %1418 = vmatpush1.xpose.msra.mxu0 0.0
        %1419 = vmatprep.mubr.f32.mxu0 0.0
        %1420 = vmatmul.mubr.f32.gmra.mrb[0].mxu0 %v1351
        %v1421 = vpop.f32.mrb[0].mxu0
        %v1422 = vadd.f32 %v1058, %v1421
        %v1423 = vpop.f32.mrb[0].mxu0
        %1424 = vdwg.mxu0
        %v1425 = vsel %vm1063, %v1422, -inf
        %1426 = vmax.xlane.f32.xlu0 %v1425
        %v1427 = vpop.xlane.xlu0 %1426
        %v1428 = vsub.f32 %v1422, %v1427
        %v1429 = vmul.f32 %v1428, 1.442695
        %v1430 = vpow.pop %v1429
        %v1431 = vsel %vm1063, %v1430, 0.0
        %1432 = vadd.xlane.f32.xlu0 %v1431
        %v1433 = vpop.xlane.xlu0 %1432
        %v1434 = vrcp.pop %v1433
        %v1435 = vmul.f32 %v1430, %v1434
        %v1436 = vpack.c.bf16 %v1435, %v1435
        %1437 = vrot.lane.b32.xlu0 %v1151, 48
        %v1438 = vpop.permute.xlu0 %1437
        %v1440 = vsel %vm1063, %v1436, 0
        %v1443 = vsel %vm1158, %v1438, 0
        %1445 = vmatprep.subr.bf16.mxu0 0
        %1446 = vmatpush1.bf16.msra.mxu0 %v1443
        %1447 = vmatprep.subr.bf16.mxu0 0
        %1448 = vmatpush1.bf16.msra.mxu0 0
        %1449 = vmatprep.subr.bf16.mxu0 0
        %1450 = vmatpush1.bf16.msra.mxu0 0
        %1451 = vmatprep.subr.bf16.mxu0 0
        %1452 = vmatpush1.bf16.msra.mxu0 0
        %1453 = vmatprep.subr.bf16.mxu0 0
        %1454 = vmatpush1.bf16.msra.mxu0 0
        %1455 = vmatprep.subr.bf16.mxu0 0
        %1456 = vmatpush1.bf16.msra.mxu0 0
        %1457 = vmatprep.subr.bf16.mxu0 0
        %1458 = vmatpush1.bf16.msra.mxu0 0
        %1459 = vmatprep.subr.bf16.mxu0 0
        %1460 = vmatpush1.bf16.msra.mxu0 0
        %1461 = vmatprep.subr.bf16.mxu0 0
        %1462 = vmatpush1.bf16.msra.mxu0 0
        %1463 = vmatprep.subr.bf16.mxu0 0
        %1464 = vmatpush1.bf16.msra.mxu0 0
        %1465 = vmatprep.subr.bf16.mxu0 0
        %1466 = vmatpush1.bf16.msra.mxu0 0
        %1467 = vmatprep.subr.bf16.mxu0 0
        %1468 = vmatpush1.bf16.msra.mxu0 0
        %1469 = vmatprep.subr.bf16.mxu0 0
        %1470 = vmatpush1.bf16.msra.mxu0 0
        %1471 = vmatprep.subr.bf16.mxu0 0
        %1472 = vmatpush1.bf16.msra.mxu0 0
        %1473 = vmatprep.subr.bf16.mxu0 0
        %1474 = vmatpush1.bf16.msra.mxu0 0
        %1475 = vmatprep.subr.bf16.mxu0 0
        %1476 = vmatpush1.bf16.msra.mxu0 0
        %1477 = vmatprep.mubr.bf16.mxu0 0
        %1478 = vmatmul.mubr.bf16.gmra.mrb[0].mxu0 %v1440
        %v1479 = vpop.f32.mrb[0].mxu0
        %v1480 = vadd.f32 0.0, %v1479
        %v1481 = vpop.f32.mrb[0].mxu0
        %v1482 = vpop.f32.mrb[0].mxu0
        %v1483 = vpop.f32.mrb[0].mxu0
        %1484 = vdwg.mxu0
        %1486 = vrot.lane.b32.xlu0 %v1480, 16
        %v1487 = vpop.permute.xlu0 %1486
        %vm1489 = vcmask 195712
        %1490 = vst.msk [vmem:[#allocation3] sm:$0xff] %vm1489, %v1487
        %1491 = vrot.lane.b32.xlu0 %v1052, 104
        %v1492 = vpop.permute.xlu0 %1491
        %1493 = vrot.lane.b32.xlu0 %v1047, 72
        %v1494 = vpop.permute.xlu0 %1493
        %v1495 = vsel %vm1063, %v1492, 0
        %v1497 = vsel %vm1063, %v1494, 0
        %1499 = vmatprep.subr.mxu0 0.0
        %1500 = vmatpush1.xpose.msra.mxu0 %v1497
        %1501 = vmatprep.subr.mxu0 0.0
        %1502 = vmatpush1.xpose.msra.mxu0 0.0
        %1503 = vmatprep.subr.mxu0 0.0
        %1504 = vmatpush1.xpose.msra.mxu0 0.0
        %1505 = vmatprep.subr.mxu0 0.0
        %1506 = vmatpush1.xpose.msra.mxu0 0.0
        %1507 = vmatprep.subr.mxu0 0.0
        %1508 = vmatpush1.xpose.msra.mxu0 0.0
        %1509 = vmatprep.subr.mxu0 0.0
        %1510 = vmatpush1.xpose.msra.mxu0 0.0
        %1511 = vmatprep.subr.mxu0 0.0
        %1512 = vmatpush1.xpose.msra.mxu0 0.0
        %1513 = vmatprep.subr.mxu0 0.0
        %1514 = vmatpush1.xpose.msra.mxu0 0.0
        %1515 = vmatprep.subr.mxu0 0.0
        %1516 = vmatpush1.xpose.msra.mxu0 0.0
        %1517 = vmatprep.subr.mxu0 0.0
        %1518 = vmatpush1.xpose.msra.mxu0 0.0
        %1519 = vmatprep.subr.mxu0 0.0
        %1520 = vmatpush1.xpose.msra.mxu0 0.0
        %1521 = vmatprep.subr.mxu0 0.0
        %1522 = vmatpush1.xpose.msra.mxu0 0.0
        %1523 = vmatprep.subr.mxu0 0.0
        %1524 = vmatpush1.xpose.msra.mxu0 0.0
        %1525 = vmatprep.subr.mxu0 0.0
        %1526 = vmatpush1.xpose.msra.mxu0 0.0
        %1527 = vmatprep.subr.mxu0 0.0
        %1528 = vmatpush1.xpose.msra.mxu0 0.0
        %1529 = vmatprep.subr.mxu0 0.0
        %1530 = vmatpush1.xpose.msra.mxu0 0.0
        %1531 = vmatprep.subr.mxu0 0.0
        %1532 = vmatpush1.xpose.msra.mxu0 0.0
        %1533 = vmatprep.subr.mxu0 0.0
        %1534 = vmatpush1.xpose.msra.mxu0 0.0
        %1535 = vmatprep.subr.mxu0 0.0
        %1536 = vmatpush1.xpose.msra.mxu0 0.0
        %1537 = vmatprep.subr.mxu0 0.0
        %1538 = vmatpush1.xpose.msra.mxu0 0.0
        %1539 = vmatprep.subr.mxu0 0.0
        %1540 = vmatpush1.xpose.msra.mxu0 0.0
        %1541 = vmatprep.subr.mxu0 0.0
        %1542 = vmatpush1.xpose.msra.mxu0 0.0
        %1543 = vmatprep.subr.mxu0 0.0
        %1544 = vmatpush1.xpose.msra.mxu0 0.0
        %1545 = vmatprep.subr.mxu0 0.0
        %1546 = vmatpush1.xpose.msra.mxu0 0.0
        %1547 = vmatprep.subr.mxu0 0.0
        %1548 = vmatpush1.xpose.msra.mxu0 0.0
        %1549 = vmatprep.subr.mxu0 0.0
        %1550 = vmatpush1.xpose.msra.mxu0 0.0
        %1551 = vmatprep.subr.mxu0 0.0
        %1552 = vmatpush1.xpose.msra.mxu0 0.0
        %1553 = vmatprep.subr.mxu0 0.0
        %1554 = vmatpush1.xpose.msra.mxu0 0.0
        %1555 = vmatprep.subr.mxu0 0.0
        %1556 = vmatpush1.xpose.msra.mxu0 0.0
        %1557 = vmatprep.subr.mxu0 0.0
        %1558 = vmatpush1.xpose.msra.mxu0 0.0
        %1559 = vmatprep.subr.mxu0 0.0
        %1560 = vmatpush1.xpose.msra.mxu0 0.0
        %1561 = vmatprep.subr.mxu0 0.0
        %1562 = vmatpush1.xpose.msra.mxu0 0.0
        %1563 = vmatprep.mubr.f32.mxu0 0.0
        %1564 = vmatmul.mubr.f32.gmra.mrb[0].mxu0 %v1495
        %v1565 = vpop.f32.mrb[0].mxu0
        %v1566 = vadd.f32 %v1058, %v1565
        %v1567 = vpop.f32.mrb[0].mxu0
        %1568 = vdwg.mxu0
        %v1569 = vsel %vm1063, %v1566, -inf
        %1570 = vmax.xlane.f32.xlu0 %v1569
        %v1571 = vpop.xlane.xlu0 %1570
        %v1572 = vsub.f32 %v1566, %v1571
        %v1573 = vmul.f32 %v1572, 1.442695
        %v1574 = vpow.pop %v1573
        %v1575 = vsel %vm1063, %v1574, 0.0
        %1576 = vadd.xlane.f32.xlu0 %v1575
        %v1577 = vpop.xlane.xlu0 %1576
        %v1578 = vrcp.pop %v1577
        %v1579 = vmul.f32 %v1574, %v1578
        %v1580 = vpack.c.bf16 %v1579, %v1579
        %1581 = vrot.lane.b32.xlu0 %v1151, 40
        %v1582 = vpop.permute.xlu0 %1581
        %v1584 = vsel %vm1063, %v1580, 0
        %v1587 = vsel %vm1158, %v1582, 0
        %1589 = vmatprep.subr.bf16.mxu0 0
        %1590 = vmatpush1.bf16.msra.mxu0 %v1587
        %1591 = vmatprep.subr.bf16.mxu0 0
        %1592 = vmatpush1.bf16.msra.mxu0 0
        %1593 = vmatprep.subr.bf16.mxu0 0
        %1594 = vmatpush1.bf16.msra.mxu0 0
        %1595 = vmatprep.subr.bf16.mxu0 0
        %1596 = vmatpush1.bf16.msra.mxu0 0
        %1597 = vmatprep.subr.bf16.mxu0 0
        %1598 = vmatpush1.bf16.msra.mxu0 0
        %1599 = vmatprep.subr.bf16.mxu0 0
        %1600 = vmatpush1.bf16.msra.mxu0 0
        %1601 = vmatprep.subr.bf16.mxu0 0
        %1602 = vmatpush1.bf16.msra.mxu0 0
        %1603 = vmatprep.subr.bf16.mxu0 0
        %1604 = vmatpush1.bf16.msra.mxu0 0
        %1605 = vmatprep.subr.bf16.mxu0 0
        %1606 = vmatpush1.bf16.msra.mxu0 0
        %1607 = vmatprep.subr.bf16.mxu0 0
        %1608 = vmatpush1.bf16.msra.mxu0 0
        %1609 = vmatprep.subr.bf16.mxu0 0
        %1610 = vmatpush1.bf16.msra.mxu0 0
        %1611 = vmatprep.subr.bf16.mxu0 0
        %1612 = vmatpush1.bf16.msra.mxu0 0
        %1613 = vmatprep.subr.bf16.mxu0 0
        %1614 = vmatpush1.bf16.msra.mxu0 0
        %1615 = vmatprep.subr.bf16.mxu0 0
        %1616 = vmatpush1.bf16.msra.mxu0 0
        %1617 = vmatprep.subr.bf16.mxu0 0
        %1618 = vmatpush1.bf16.msra.mxu0 0
        %1619 = vmatprep.subr.bf16.mxu0 0
        %1620 = vmatpush1.bf16.msra.mxu0 0
        %1621 = vmatprep.mubr.bf16.mxu0 0
        %1622 = vmatmul.mubr.bf16.gmra.mrb[0].mxu0 %v1584
        %v1623 = vpop.f32.mrb[0].mxu0
        %v1624 = vadd.f32 0.0, %v1623
        %v1625 = vpop.f32.mrb[0].mxu0
        %v1626 = vpop.f32.mrb[0].mxu0
        %v1627 = vpop.f32.mrb[0].mxu0
        %1628 = vdwg.mxu0
        %1630 = vrot.lane.b32.xlu0 %v1624, 24
        %v1631 = vpop.permute.xlu0 %1630
        %vm1633 = vcmask 261312
        %1634 = vst.msk [vmem:[#allocation3] sm:$0xff] %vm1633, %v1631
        %v1635 = vld [vmem:[#allocation3] sm:$0xff]
        %v1636 = vpack.c.bf16 %v1635, %v1635
        %v1637 = vld [vmem:[%s791] sm:$0xf]
        %v1638 = vld [vmem:[%s791 + $0x4] sm:$0xf]
        %v1639 = vld [vmem:[%s791 + $0x8] sm:$0xf]
        %v1640 = vld [vmem:[%s791 + $0xc] sm:$0xf]
        %v1641 = vld [vmem:[%s799] sm:$0x1]
        %v1643 = vlaneseq
        %v1644 = vshrl.u32 %v1643, 7
        %v1645 = vsub.s32 0, %v1644
        %v1646 = vrot.slane %v1641, %v1645
        %v1652 = vunpack.c.l.b16 %v1637
        %v1653 = vunpack.c.l.b16 %v1638
        %v1654 = vunpack.c.l.b16 %v1639
        %v1655 = vunpack.c.l.b16 %v1640
        %v1656 = vpack.c.b16 %v1653, %v1652
        %v1657 = vpack.c.b16 %v1655, %v1654
        %v1661 = vsel %vm1008, %v1636, 0
        %1663 = vmatprep.subr.bf16.mxu0 0
        %1664 = vmatpush1.bf16.msra.mxu0 %v1656
        %1665 = vmatprep.subr.bf16.mxu0 0
        %1666 = vmatpush1.bf16.msra.mxu0 %v1657
        %1667 = vmatprep.subr.bf16.mxu0 0
        %1668 = vmatpush1.bf16.msra.mxu0 0
        %1669 = vmatprep.subr.bf16.mxu0 0
        %1670 = vmatpush1.bf16.msra.mxu0 0
        %1671 = vmatprep.subr.bf16.mxu0 0
        %1672 = vmatpush1.bf16.msra.mxu0 0
        %1673 = vmatprep.subr.bf16.mxu0 0
        %1674 = vmatpush1.bf16.msra.mxu0 0
        %1675 = vmatprep.subr.bf16.mxu0 0
        %1676 = vmatpush1.bf16.msra.mxu0 0
        %1677 = vmatprep.subr.bf16.mxu0 0
        %1678 = vmatpush1.bf16.msra.mxu0 0
        %1679 = vmatprep.subr.bf16.mxu0 0
        %1680 = vmatpush1.bf16.msra.mxu0 0
        %1681 = vmatprep.subr.bf16.mxu0 0
        %1682 = vmatpush1.bf16.msra.mxu0 0
        %1683 = vmatprep.subr.bf16.mxu0 0
        %1684 = vmatpush1.bf16.msra.mxu0 0
        %1685 = vmatprep.subr.bf16.mxu0 0
        %1686 = vmatpush1.bf16.msra.mxu0 0
        %1687 = vmatprep.subr.bf16.mxu0 0
        %1688 = vmatpush1.bf16.msra.mxu0 0
        %1689 = vmatprep.subr.bf16.mxu0 0
        %1690 = vmatpush1.bf16.msra.mxu0 0
        %1691 = vmatprep.subr.bf16.mxu0 0
        %1692 = vmatpush1.bf16.msra.mxu0 0
        %1693 = vmatprep.subr.bf16.mxu0 0
        %1694 = vmatpush1.bf16.msra.mxu0 0
        %1695 = vmatprep.mubr.bf16.mxu0 0
        %1696 = vmatmul.mubr.bf16.gmra.mrb[0].mxu0 %v1661
        %v1697 = vpop.f32.mrb[0].mxu0
        %v1698 = vadd.f32 %v1646, %v1697
        %v1699 = vpop.f32.mrb[0].mxu0
        %v1700 = vpop.f32.mrb[0].mxu0
        %v1701 = vpop.f32.mrb[0].mxu0
        %1702 = vdwg.mxu0
        %v1703 = vadd.f32 %v1698, %v983
        %v1704 = vld [vmem:[%s807] sm:$0x1]
        %v1705 = vld [vmem:[%s815] sm:$0x1]
        %v1706 = vsel %vm1008, %v1703, 0.0
        %1707 = vadd.xlane.f32.xlu0 %v1706
        %v1708 = vpop.xlane.xlu0 %1707
        %v1709 = vrcp.pop 32.0
        %v1710 = vmul.f32 %v1708, %v1709
        %v1711 = vsub.f32 %v1703, %v1710
        %v1712 = vmul.f32 %v1711, %v1711
        %v1713 = vsel %vm1008, %v1712, 0.0
        %1714 = vadd.xlane.f32.xlu0 %v1713
        %v1715 = vpop.xlane.xlu0 %1714
        %v1716 = vmul.f32 %v1715, %v1709
        %v1717 = vadd.f32 %v1716, 1e-12
        %v1718 = vrsqrt.pop %v1717
        %v1719 = vmul.f32 %v1711, %v1718
        %v1721 = vlaneseq
        %v1722 = vshrl.u32 %v1721, 7
        %v1723 = vsub.s32 0, %v1722
        %v1724 = vrot.slane %v1704, %v1723
        %v1726 = vmul.f32 %v1719, %v1724
        %v1728 = vlaneseq
        %v1729 = vshrl.u32 %v1728, 7
        %v1730 = vsub.s32 0, %v1729
        %v1731 = vrot.slane %v1705, %v1730
        %v1733 = vadd.f32 %v1726, %v1731
        %v1734 = vpack.c.bf16 %v1733, %v1733
        %v1735 = vld [vmem:[%s824] sm:$0xf]
        %v1736 = vld [vmem:[%s824 + $0x4] sm:$0xf]
        %v1737 = vld [vmem:[%s824 + $0x8] sm:$0xf]
        %v1738 = vld [vmem:[%s824 + $0xc] sm:$0xf]
        %v1739 = vld [vmem:[%s832] sm:$0x1]
        %v1741 = vlaneseq
        %v1742 = vshrl.u32 %v1741, 7
        %v1743 = vsub.s32 0, %v1742
        %v1744 = vrot.slane %v1739, %v1743
        %v1750 = vunpack.c.l.b16 %v1735
        %v1751 = vunpack.c.l.b16 %v1736
        %v1752 = vunpack.c.l.b16 %v1737
        %v1753 = vunpack.c.l.b16 %v1738
        %v1754 = vpack.c.b16 %v1751, %v1750
        %v1755 = vpack.c.b16 %v1753, %v1752
        %v1759 = vsel %vm1008, %v1734, 0
        %1761 = vmatprep.subr.bf16.mxu0 0
        %1762 = vmatpush1.bf16.msra.mxu0 %v1754
        %1763 = vmatprep.subr.bf16.mxu0 0
        %1764 = vmatpush1.bf16.msra.mxu0 %v1755
        %1765 = vmatprep.subr.bf16.mxu0 0
        %1766 = vmatpush1.bf16.msra.mxu0 0
        %1767 = vmatprep.subr.bf16.mxu0 0
        %1768 = vmatpush1.bf16.msra.mxu0 0
        %1769 = vmatprep.subr.bf16.mxu0 0
        %1770 = vmatpush1.bf16.msra.mxu0 0
        %1771 = vmatprep.subr.bf16.mxu0 0
        %1772 = vmatpush1.bf16.msra.mxu0 0
        %1773 = vmatprep.subr.bf16.mxu0 0
        %1774 = vmatpush1.bf16.msra.mxu0 0
        %1775 = vmatprep.subr.bf16.mxu0 0
        %1776 = vmatpush1.bf16.msra.mxu0 0
        %1777 = vmatprep.subr.bf16.mxu0 0
        %1778 = vmatpush1.bf16.msra.mxu0 0
        %1779 = vmatprep.subr.bf16.mxu0 0
        %1780 = vmatpush1.bf16.msra.mxu0 0
        %1781 = vmatprep.subr.bf16.mxu0 0
        %1782 = vmatpush1.bf16.msra.mxu0 0
        %1783 = vmatprep.subr.bf16.mxu0 0
        %1784 = vmatpush1.bf16.msra.mxu0 0
        %1785 = vmatprep.subr.bf16.mxu0 0
        %1786 = vmatpush1.bf16.msra.mxu0 0
        %1787 = vmatprep.subr.bf16.mxu0 0
        %1788 = vmatpush1.bf16.msra.mxu0 0
        %1789 = vmatprep.subr.bf16.mxu0 0
        %1790 = vmatpush1.bf16.msra.mxu0 0
        %1791 = vmatprep.subr.bf16.mxu0 0
        %1792 = vmatpush1.bf16.msra.mxu0 0
        %1793 = vmatprep.mubr.bf16.mxu0 0
        %1794 = vmatmul.mubr.bf16.gmra.mrb[0].mxu0 %v1759
        %v1795 = vpop.f32.mrb[0].mxu0
        %v1796 = vadd.f32 %v1744, %v1795
        %v1797 = vpop.f32.mrb[0].mxu0
        %v1798 = vpop.f32.mrb[0].mxu0
        %v1799 = vpop.f32.mrb[0].mxu0
        %1800 = vdwg.mxu0
        %v1801 = vmul.f32 %v1796, 0.5
        %v1802 = vmul.f32 %v1796, 0.044715
        %v1803 = vmul.f32 %v1802, %v1796
        %v1804 = vmul.f32 %v1803, %v1796
        %v1805 = vadd.f32 %v1796, %v1804
        %v1806 = vmul.f32 %v1805, 0.7978846
        %v1807 = vtanh.pop %v1806
        %v1808 = vadd.f32 %v1807, 1.0
        %v1809 = vmul.f32 %v1801, %v1808
        %v1810 = vpack.c.bf16 %v1809, %v1809
        %v1811 = vld [vmem:[%s841] sm:$0xf]
        %v1812 = vld [vmem:[%s841 + $0x4] sm:$0xf]
        %v1813 = vld [vmem:[%s841 + $0x8] sm:$0xf]
        %v1814 = vld [vmem:[%s841 + $0xc] sm:$0xf]
        %v1815 = vld [vmem:[%s841 + $0x10] sm:$0xf]
        %v1816 = vld [vmem:[%s841 + $0x14] sm:$0xf]
        %v1817 = vld [vmem:[%s841 + $0x18] sm:$0xf]
        %v1818 = vld [vmem:[%s841 + $0x1c] sm:$0xf]
        %v1819 = vld [vmem:[%s849] sm:$0x1]
        %v1821 = vlaneseq
        %v1822 = vshrl.u32 %v1821, 7
        %v1823 = vsub.s32 0, %v1822
        %v1824 = vrot.slane %v1819, %v1823
        %v1834 = vunpack.c.l.b16 %v1811
        %v1835 = vunpack.c.l.b16 %v1812
        %v1836 = vunpack.c.l.b16 %v1813
        %v1837 = vunpack.c.l.b16 %v1814
        %v1838 = vunpack.c.l.b16 %v1815
        %v1839 = vunpack.c.l.b16 %v1816
        %v1840 = vunpack.c.l.b16 %v1817
        %v1841 = vunpack.c.l.b16 %v1818
        %v1842 = vpack.c.b16 %v1835, %v1834
        %v1843 = vpack.c.b16 %v1837, %v1836
        %v1844 = vpack.c.b16 %v1839, %v1838
        %v1845 = vpack.c.b16 %v1841, %v1840
        %vm1850 = vcmask 523264
        %v1852 = vsel %vm1850, %v1810, 0
        %1854 = vmatprep.subr.bf16.mxu0 0
        %1855 = vmatpush1.bf16.msra.mxu0 %v1842
        %1856 = vmatprep.subr.bf16.mxu0 0
        %1857 = vmatpush1.bf16.msra.mxu0 %v1843
        %1858 = vmatprep.subr.bf16.mxu0 0
        %1859 = vmatpush1.bf16.msra.mxu0 %v1844
        %1860 = vmatprep.subr.bf16.mxu0 0
        %1861 = vmatpush1.bf16.msra.mxu0 %v1845
        %1862 = vmatprep.subr.bf16.mxu0 0
        %1863 = vmatpush1.bf16.msra.mxu0 0
        %1864 = vmatprep.subr.bf16.mxu0 0
        %1865 = vmatpush1.bf16.msra.mxu0 0
        %1866 = vmatprep.subr.bf16.mxu0 0
        %1867 = vmatpush1.bf16.msra.mxu0 0
        %1868 = vmatprep.subr.bf16.mxu0 0
        %1869 = vmatpush1.bf16.msra.mxu0 0
        %1870 = vmatprep.subr.bf16.mxu0 0
        %1871 = vmatpush1.bf16.msra.mxu0 0
        %1872 = vmatprep.subr.bf16.mxu0 0
        %1873 = vmatpush1.bf16.msra.mxu0 0
        %1874 = vmatprep.subr.bf16.mxu0 0
        %1875 = vmatpush1.bf16.msra.mxu0 0
        %1876 = vmatprep.subr.bf16.mxu0 0
        %1877 = vmatpush1.bf16.msra.mxu0 0
        %1878 = vmatprep.subr.bf16.mxu0 0
        %1879 = vmatpush1.bf16.msra.mxu0 0
        %1880 = vmatprep.subr.bf16.mxu0 0
        %1881 = vmatpush1.bf16.msra.mxu0 0
        %1882 = vmatprep.subr.bf16.mxu0 0
        %1883 = vmatpush1.bf16.msra.mxu0 0
        %1884 = vmatprep.subr.bf16.mxu0 0
        %1885 = vmatpush1.bf16.msra.mxu0 0
        %1886 = vmatprep.mubr.bf16.mxu0 0
        %1887 = vmatmul.mubr.bf16.gmra.mrb[0].mxu0 %v1852
        %v1888 = vpop.f32.mrb[0].mxu0
        %v1889 = vadd.f32 %v1824, %v1888
        %v1890 = vpop.f32.mrb[0].mxu0
        %v1891 = vpop.f32.mrb[0].mxu0
        %v1892 = vpop.f32.mrb[0].mxu0
        %1893 = vdwg.mxu0
        %v1894 = vadd.f32 %v1889, %v1733
        %v1895 = vld [vmem:[%s857] sm:$0x1]
        %v1896 = vld [vmem:[%s865] sm:$0x1]
        %v1897 = vsel %vm1008, %v1894, 0.0
        %1898 = vadd.xlane.f32.xlu0 %v1897
        %v1899 = vpop.xlane.xlu0 %1898
        %v1900 = vmul.f32 %v1899, %v1709
        %v1901 = vsub.f32 %v1894, %v1900
        %v1902 = vmul.f32 %v1901, %v1901
        %v1903 = vsel %vm1008, %v1902, 0.0
        %1904 = vadd.xlane.f32.xlu0 %v1903
        %v1905 = vpop.xlane.xlu0 %1904
        %v1906 = vmul.f32 %v1905, %v1709
        %v1907 = vadd.f32 %v1906, 1e-12
        %v1908 = vrsqrt.pop %v1907
        %v1909 = vmul.f32 %v1901, %v1908
        %v1911 = vlaneseq
        %v1912 = vshrl.u32 %v1911, 7
        %v1913 = vsub.s32 0, %v1912
        %v1914 = vrot.slane %v1895, %v1913
        %v1916 = vmul.f32 %v1909, %v1914
        %v1918 = vlaneseq
        %v1919 = vshrl.u32 %v1918, 7
        %v1920 = vsub.s32 0, %v1919
        %v1921 = vrot.slane %v1896, %v1920
        %v1923 = vadd.f32 %v1916, %v1921
        %1924 = vst.msk [vmem:[%s982] sm:$0xff] %vm1008, %v1923
        %vm1925 = vcmask 253952
        %1926 = vst.msk [vmem:[%s964] sm:$0x1] %vm1925, %v1923
        %s1927 = sand.u32 %s455, 1
        %s1928 = scalar_lea.sflag [#allocation6], %s1927
        %s1929 = sand.u32 %s455, 1
        %s1930 = scalar_lea.vmem [#allocation27], %s1929
        // Predicated region
        $region137: #{tpu_custom_call.1} parent=75 // pred_check
          %p1931 = pneg %p465
        $region138: #{tpu_custom_call.1} parent=75 // pred_check_branch
          %1933 = sbr.rel (%p1931) target = $region140
        $region139: #{tpu_custom_call.1} parent=75 // pred_region
          %s1934 = smul.u32 %s57, 2
          %s1935 = sadd.s32 %s1934, %s59
          %s1937 = ssub.s32 16, 16
          %1938 = vsyncadd %s1928, %s1937
          %s1939 = smul.addr %s1935, 16
          %s1940 = scalar_lea.hbm %s14, %s1939
          %s1942 = sshll.u32 %s1930, 4
          %s1943 = int_to_ptr.vmem [resolvable:$true] %s1942
          %1945 = dma.vmem_to_hbm [thread:$0]  %s1943, 16, %s1940, %s1928
        $region140: #{tpu_custom_call.1} parent=75 // pred_fallthru
          _
      $region76: #{tpu_custom_call.1} parent=5 // pred_fallthru
        _
      %p1946 = scmp.le.s32.totalorder 2, %s47
      // Predicated region
      $region141: #{tpu_custom_call.1} parent=5 // pred_check
        %p1947 = pneg %p1946
      $region142: #{tpu_custom_call.1} parent=5 // pred_check_branch
        %1949 = sbr.rel (%p1947) target = $region144
      $region143: #{tpu_custom_call.1} parent=5 // pred_region
        %s1950 = ssub.s32 %s47, 2
        // Predicated region
        $region145: #{tpu_custom_call.1} parent=143 // pred_check
          %p1951 = pneg %p471
        $region146: #{tpu_custom_call.1} parent=143 // pred_check_branch
          %1953 = sbr.rel (%p1951) target = $region148
        $region147: #{tpu_custom_call.1} parent=143 // pred_region
          %s1954 = sand.u32 %s456, 1
          %s1955 = scalar_lea.sflag [#allocation6], %s1954
          %s1956 = sand.u32 %s456, 1
          %s1957 = scalar_lea.vmem [#allocation27], %s1956
          %1958 = dma.done %s1955, 16
        $region148: #{tpu_custom_call.1} parent=143 // pred_fallthru
          _
      $region144: #{tpu_custom_call.1} parent=5 // pred_fallthru
        _
    $region6: #{tpu_custom_call.1} parent=1 // loop_footer
      %s51 = sadd.s32 1, %s47
    $region7: #{tpu_custom_call.1} parent=1 // loop_footer_branch
      %46 = sbr.rel target = $region3
    $region8: #{tpu_custom_call.1} parent=1 // loop_exit
      _
    %1959 = vsyncpa [#allocation5], 1
    %s1960 = scalar_lea.sflag [#allocation5], 1
    %1961 = vsyncpa %s1960, 1
    %1962 = vsyncpa [#allocation8], 1
    %s1963 = scalar_lea.sflag [#allocation8], 1
    %1964 = vsyncpa %s1963, 1
    %1965 = vsyncpa [#allocation11], 1
    %s1966 = scalar_lea.sflag [#allocation11], 1
    %1967 = vsyncpa %s1966, 1
    %1968 = vsyncpa [#allocation14], 1
    %s1969 = scalar_lea.sflag [#allocation14], 1
    %1970 = vsyncpa %s1969, 1
    %1971 = vsyncpa [#allocation17], 1
    %s1972 = scalar_lea.sflag [#allocation17], 1
    %1973 = vsyncpa %s1972, 1
    %1974 = vsyncpa [#allocation20], 1
    %s1975 = scalar_lea.sflag [#allocation20], 1
    %1976 = vsyncpa %s1975, 1
    %1977 = vsyncpa [#allocation23], 1
    %s1978 = scalar_lea.sflag [#allocation23], 1
    %1979 = vsyncpa %s1978, 1
    %1980 = vsyncpa [#allocation26], 1
    %s1981 = scalar_lea.sflag [#allocation26], 1
    %1982 = vsyncpa %s1981, 1
    %1983 = vsyncpa [#allocation6], 1
    %s1984 = scalar_lea.sflag [#allocation6], 1
    %1985 = vsyncpa %s1984, 1

</llo_original>
